<compile_context>
chip_gen: v7x
topology: tpu7x:2x2x1
jax: 0.10.0
libtpu: 0.0.40
codegen_flags: <defaults>
</compile_context>

<pallas_src>
import numpy as np
import jax
import jax.numpy as jnp
from jax.experimental import pallas as pl
from jax.experimental.pallas import tpu as pltpu

N_NODES = 64                  # number of graph nodes ("batch" of the module)
SEQ_FEATS = 72                # inputLength of the module
X_COLS = 421 + SEQ_FEATS      # 493 columns of data.x
XWIN = 128                    # lane-aligned padded x window (real cols 0:72)
HID = 64                      # LSTM hidden size
G = 3 * HID                   # packed gate width (i, g, o); forget gate dropped
OUT_PAD = 128                 # padded head width (real output = 4 lanes)
LSTM_W_ROWS = XWIN + 2 * HID  # 256
HEAD_W_ROWS = 5 * HID         # 320
F32 = jnp.float32
BF16 = jnp.bfloat16


def _sigmoid(v):
    # exact, overflow-free, EUP-routed formulation
    return 0.5 * (jnp.tanh(0.5 * v) + 1.0)


def _leaky(v):
    return jnp.where(v > 0, v, 0.01 * v)   # nn.LeakyReLU default slope


def _relu(v):
    return jnp.maximum(v, 0.0)


def sfgat_lstm_long_kernel(x_ref, lstm_w_ref, head_w_ref, bias_ref, out_ref):
    def mm(a, w):
        # bf16 MXU inputs, f32 accumulation (x arrives already bf16)
        if a.dtype != BF16:
            a = a.astype(BF16)
        return jnp.dot(a, w, preferred_element_type=F32)

    # --- 3-layer LSTM, seq_len = 1, h0 = c0 = 0.
    # W_hh @ h0 = 0 and f * c0 = 0, so recurrent weights / forget gate are
    # omitted exactly.  Gates packed (i, g, o).
    def lstm_layer(inp, w, b):
        g = mm(inp, w) + b                          # [N, 192] f32
        i = _sigmoid(g[:, 0:HID])
        c = i * jnp.tanh(g[:, HID:2 * HID])         # c1 = i * g
        o = _sigmoid(g[:, 2 * HID:3 * HID])
        return o * jnp.tanh(c)                      # [N, 64] f32

    x = x_ref[...]                                              # [N, 128] bf16
    h = lstm_layer(x, lstm_w_ref[0:XWIN, :], bias_ref[0:1, :])                  # layer 0
    h = lstm_layer(h, lstm_w_ref[XWIN:XWIN + HID, :], bias_ref[1:2, :])         # layer 1
    h = lstm_layer(h, lstm_w_ref[XWIN + HID:XWIN + 2 * HID, :], bias_ref[2:3, :])  # hn[2]

    # --- head MLP.  Each layer contracts only its 64 real input lanes;
    # outputs are padded to 128 lanes (pad weights/biases are 0, so the pad
    # lanes stay exactly 0 through LeakyReLU/ReLU).  Only the final full
    # [N, 128] tile is stored.
    def head(a, blk, brow):
        w = head_w_ref[blk * HID:(blk + 1) * HID, :]            # [64, 128]
        return mm(a, w) + bias_ref[brow:brow + 1, 0:OUT_PAD]

    t = _leaky(head(h, 0, 3))                 # time1
    t = _leaky(head(t[:, 0:HID], 1, 4))       # time2
    z = _relu(head(t[:, 0:HID], 2, 5))        # linear1
    z = _relu(head(z[:, 0:HID], 3, 6))        # linear2
    out_ref[...] = head(z[:, 0:HID], 4, 7)    # linear3  -> [N, 128] f32


def init_params(key):
    """Create synthetic module weights and pack them into kernel buffers."""
    ks = iter(jax.random.split(key, 32))
    scale = 0.05

    def rnd(shape):
        return jax.random.normal(next(ks), shape, F32) * scale

    raw = {
        # LSTM: W_ih per layer, gate order (i, g, o); forget gate dropped
        # (exact: f-gate only multiplies c0 = 0).  W_hh omitted (h0 = 0).
        # NOTE for real checkpoints: PyTorch packs gates (i, f, g, o) and
        # splits biases b_ih + b_hh -- a loader must reorder, drop f, and sum.
        "wih": [rnd((SEQ_FEATS, G)), rnd((HID, G)), rnd((HID, G))],
        "bl": [rnd((G,)) + rnd((G,)) for _ in range(3)],        # b_ih + b_hh
        # head linears: time1, time2, linear1, linear2 (64->64), linear3 (64->4)
        "head_w": [rnd((HID, HID)) for _ in range(4)] + [rnd((HID, 4))],
        "head_b": [rnd((HID,)) for _ in range(4)] + [rnd((4,))],
    }

    # ---- pack into contiguous kernel buffers ----
    # LSTM weights: [256, 192]; rows 0:128 are the layer-0 weight with the
    # real 72 rows at offset 0 (matches the wrapper's padded x window).
    lstm_w = np.zeros((LSTM_W_ROWS, G), np.float32)
    lstm_w[0:SEQ_FEATS, :] = np.asarray(raw["wih"][0])
    lstm_w[XWIN:XWIN + HID, :] = np.asarray(raw["wih"][1])
    lstm_w[XWIN + HID:XWIN + 2 * HID, :] = np.asarray(raw["wih"][2])

    # Head weights: [320, 128]; 64-row block per layer, real cols top-left.
    head_w = np.zeros((HEAD_W_ROWS, OUT_PAD), np.float32)
    for l in range(4):
        head_w[l * HID:(l + 1) * HID, 0:HID] = np.asarray(raw["head_w"][l])
    head_w[4 * HID:5 * HID, 0:4] = np.asarray(raw["head_w"][4])

    # Single bias slab: rows 0:3 = LSTM layer biases (192 wide, gates i,g,o),
    # rows 3:8 = head biases packed into lanes 0:128.
    bias = np.zeros((8, G), np.float32)
    for l in range(3):
        bias[l, :] = np.asarray(raw["bl"][l])
    for l in range(4):
        bias[3 + l, 0:HID] = np.asarray(raw["head_b"][l])
    bias[7, 0:4] = np.asarray(raw["head_b"][4])

    packed = dict(
        lstm_w=jnp.asarray(lstm_w, BF16),     # [256, 192] bf16  (~96 KiB)
        head_w=jnp.asarray(head_w, BF16),     # [320, 128] bf16  (~80 KiB)
        bias=jnp.asarray(bias, F32),          # [  8, 192] f32   (~ 6 KiB)
    )
    return packed, raw


def sfgat_lstm_long_forward(x_all, packed):
    n = x_all.shape[0]
    # One tiny fused op: slice the 72 seq columns, cast to bf16, pad to 128
    # lanes.  [N, 128] bf16 = 16 KiB of x traffic into the kernel.
    x_win = x_all[:, 421:421 + SEQ_FEATS].astype(BF16)
    x_pad = jnp.pad(x_win, ((0, 0), (0, XWIN - SEQ_FEATS)))

    vmem = pl.BlockSpec(memory_space=pltpu.MemorySpace.VMEM)
    out_pad = pl.pallas_call(
        sfgat_lstm_long_kernel,
        out_shape=jax.ShapeDtypeStruct((n, OUT_PAD), F32),
        in_specs=[vmem] * 4,
        out_specs=vmem,
        cost_estimate=pl.CostEstimate(
            flops=12_000_000, transcendentals=50_000, bytes_accessed=235_000),
    )(x_pad, packed["lstm_w"], packed["head_w"], packed["bias"])
    return out_pad[:, :4]


def reference_forward(x_all, raw):
    """Pure-JAX reference using the unpacked weights (same bf16 matmul inputs)."""
    def mm(a, w):
        return jnp.dot(a.astype(BF16), jnp.asarray(w, BF16),
                       preferred_element_type=F32)

    h = x_all[:, 421:421 + SEQ_FEATS]
    for l in range(3):
        g = mm(h, raw["wih"][l]) + raw["bl"][l][None, :]
        i = _sigmoid(g[:, 0:HID])
        c = i * jnp.tanh(g[:, HID:2 * HID])
        o = _sigmoid(g[:, 2 * HID:3 * HID])
        h = o * jnp.tanh(c)
    z = _leaky(mm(h, raw["head_w"][0]) + raw["head_b"][0][None, :])
    z = _leaky(mm(z, raw["head_w"][1]) + raw["head_b"][1][None, :])
    z = jnp.maximum(mm(z, raw["head_w"][2]) + raw["head_b"][2][None, :], 0.0)
    z = jnp.maximum(mm(z, raw["head_w"][3]) + raw["head_b"][3][None, :], 0.0)
    return mm(z, raw["head_w"][4]) + raw["head_b"][4][None, :]


if __name__ == "__main__":
    key = jax.random.PRNGKey(0)
    k_x, k_p = jax.random.split(key)

    x_all = jax.random.normal(k_x, (N_NODES, X_COLS), F32)
    packed, raw = init_params(k_p)

    out = sfgat_lstm_long_forward(x_all, packed)
    jax.block_until_ready(out)
    assert out.shape == (N_NODES, 4) and out.dtype == F32
    assert bool(jnp.all(jnp.isfinite(out)))

    ref = reference_forward(x_all, raw)
    err = float(jnp.max(jnp.abs(out - ref)))
    assert err < 1e-2, f"kernel/reference mismatch: {err}"
    print("KERNEL_OK")
</pallas_src>

<mosaic_0001>
module attributes {stable_mosaic.version = 11 : i64} {
  func.func @sfgat_lstm_long_kernel(%arg0: memref<64x128xbf16, #tpu.memory_space<vmem>>, %arg1: memref<256x192xbf16, #tpu.memory_space<vmem>>, %arg2: memref<320x128xbf16, #tpu.memory_space<vmem>>, %arg3: memref<8x192xf32, #tpu.memory_space<vmem>>, %arg4: memref<64x128xf32, #tpu.memory_space<vmem>>) attributes {dimension_semantics = [], scalar_prefetch = 0 : i64, scratch_operands = 0 : i64, tpu.core_type = #tpu.core_type<tc>} {
    %c0 = arith.constant 0 : index
    %c0_0 = arith.constant 0 : index
    %0 = vector.load %arg0[%c0, %c0_0] : memref<64x128xbf16, #tpu.memory_space<vmem>>, vector<64x128xbf16>
    %c0_1 = arith.constant 0 : index
    %c0_2 = arith.constant 0 : index
    %1 = vector.load %arg1[%c0_1, %c0_2] : memref<256x192xbf16, #tpu.memory_space<vmem>>, vector<128x192xbf16>
    %c0_3 = arith.constant 0 : index
    %c0_4 = arith.constant 0 : index
    %2 = vector.load %arg3[%c0_3, %c0_4] : memref<8x192xf32, #tpu.memory_space<vmem>>, vector<1x192xf32>
    %cst = arith.constant dense<0.000000e+00> : vector<64x192xf32>
    %3 = tpu.matmul %0, %1, %cst {dimension_numbers = #tpu.dot_dimension_numbers<[1], [0], [0], [1], [0, 0, 1, 1], [], []>} : vector<64x128xbf16>, vector<128x192xbf16>, vector<64x192xf32> -> vector<64x192xf32>
    %4 = vector.broadcast %2 : vector<1x192xf32> to vector<64x192xf32>
    %5 = arith.addf %3, %4 : vector<64x192xf32>
    %6 = vector.extract_strided_slice %5 {offsets = [0, 0], sizes = [64, 64], strides = [1, 1]} : vector<64x192xf32> to vector<64x64xf32>
    %cst_5 = arith.constant 5.000000e-01 : f32
    %7 = vector.broadcast %cst_5 : f32 to vector<64x64xf32>
    %8 = arith.mulf %7, %6 : vector<64x64xf32>
    %9 = math.tanh %8 : vector<64x64xf32>
    %cst_6 = arith.constant 1.000000e+00 : f32
    %10 = vector.broadcast %cst_6 : f32 to vector<64x64xf32>
    %11 = arith.addf %9, %10 : vector<64x64xf32>
    %cst_7 = arith.constant 5.000000e-01 : f32
    %12 = vector.broadcast %cst_7 : f32 to vector<64x64xf32>
    %13 = arith.mulf %12, %11 : vector<64x64xf32>
    %14 = vector.extract_strided_slice %5 {offsets = [0, 64], sizes = [64, 64], strides = [1, 1]} : vector<64x192xf32> to vector<64x64xf32>
    %15 = math.tanh %14 : vector<64x64xf32>
    %16 = arith.mulf %13, %15 : vector<64x64xf32>
    %17 = vector.extract_strided_slice %5 {offsets = [0, 128], sizes = [64, 64], strides = [1, 1]} : vector<64x192xf32> to vector<64x64xf32>
    %cst_8 = arith.constant 5.000000e-01 : f32
    %18 = vector.broadcast %cst_8 : f32 to vector<64x64xf32>
    %19 = arith.mulf %18, %17 : vector<64x64xf32>
    %20 = math.tanh %19 : vector<64x64xf32>
    %cst_9 = arith.constant 1.000000e+00 : f32
    %21 = vector.broadcast %cst_9 : f32 to vector<64x64xf32>
    %22 = arith.addf %20, %21 : vector<64x64xf32>
    %cst_10 = arith.constant 5.000000e-01 : f32
    %23 = vector.broadcast %cst_10 : f32 to vector<64x64xf32>
    %24 = arith.mulf %23, %22 : vector<64x64xf32>
    %25 = math.tanh %16 : vector<64x64xf32>
    %26 = arith.mulf %24, %25 : vector<64x64xf32>
    %c128 = arith.constant 128 : index
    %c0_11 = arith.constant 0 : index
    %27 = vector.load %arg1[%c128, %c0_11] : memref<256x192xbf16, #tpu.memory_space<vmem>>, vector<64x192xbf16>
    %c1 = arith.constant 1 : index
    %c0_12 = arith.constant 0 : index
    %28 = vector.load %arg3[%c1, %c0_12] : memref<8x192xf32, #tpu.memory_space<vmem>>, vector<1x192xf32>
    %29 = arith.truncf %26 : vector<64x64xf32> to vector<64x64xbf16>
    %cst_13 = arith.constant dense<0.000000e+00> : vector<64x192xf32>
    %30 = tpu.matmul %29, %27, %cst_13 {dimension_numbers = #tpu.dot_dimension_numbers<[1], [0], [0], [1], [0, 0, 1, 1], [], []>} : vector<64x64xbf16>, vector<64x192xbf16>, vector<64x192xf32> -> vector<64x192xf32>
    %31 = vector.broadcast %28 : vector<1x192xf32> to vector<64x192xf32>
    %32 = arith.addf %30, %31 : vector<64x192xf32>
    %33 = vector.extract_strided_slice %32 {offsets = [0, 0], sizes = [64, 64], strides = [1, 1]} : vector<64x192xf32> to vector<64x64xf32>
    %cst_14 = arith.constant 5.000000e-01 : f32
    %34 = vector.broadcast %cst_14 : f32 to vector<64x64xf32>
    %35 = arith.mulf %34, %33 : vector<64x64xf32>
    %36 = math.tanh %35 : vector<64x64xf32>
    %cst_15 = arith.constant 1.000000e+00 : f32
    %37 = vector.broadcast %cst_15 : f32 to vector<64x64xf32>
    %38 = arith.addf %36, %37 : vector<64x64xf32>
    %cst_16 = arith.constant 5.000000e-01 : f32
    %39 = vector.broadcast %cst_16 : f32 to vector<64x64xf32>
    %40 = arith.mulf %39, %38 : vector<64x64xf32>
    %41 = vector.extract_strided_slice %32 {offsets = [0, 64], sizes = [64, 64], strides = [1, 1]} : vector<64x192xf32> to vector<64x64xf32>
    %42 = math.tanh %41 : vector<64x64xf32>
    %43 = arith.mulf %40, %42 : vector<64x64xf32>
    %44 = vector.extract_strided_slice %32 {offsets = [0, 128], sizes = [64, 64], strides = [1, 1]} : vector<64x192xf32> to vector<64x64xf32>
    %cst_17 = arith.constant 5.000000e-01 : f32
    %45 = vector.broadcast %cst_17 : f32 to vector<64x64xf32>
    %46 = arith.mulf %45, %44 : vector<64x64xf32>
    %47 = math.tanh %46 : vector<64x64xf32>
    %cst_18 = arith.constant 1.000000e+00 : f32
    %48 = vector.broadcast %cst_18 : f32 to vector<64x64xf32>
    %49 = arith.addf %47, %48 : vector<64x64xf32>
    %cst_19 = arith.constant 5.000000e-01 : f32
    %50 = vector.broadcast %cst_19 : f32 to vector<64x64xf32>
    %51 = arith.mulf %50, %49 : vector<64x64xf32>
    %52 = math.tanh %43 : vector<64x64xf32>
    %53 = arith.mulf %51, %52 : vector<64x64xf32>
    %c192 = arith.constant 192 : index
    %c0_20 = arith.constant 0 : index
    %54 = vector.load %arg1[%c192, %c0_20] : memref<256x192xbf16, #tpu.memory_space<vmem>>, vector<64x192xbf16>
    %c2 = arith.constant 2 : index
    %c0_21 = arith.constant 0 : index
    %55 = vector.load %arg3[%c2, %c0_21] : memref<8x192xf32, #tpu.memory_space<vmem>>, vector<1x192xf32>
    %56 = arith.truncf %53 : vector<64x64xf32> to vector<64x64xbf16>
    %cst_22 = arith.constant dense<0.000000e+00> : vector<64x192xf32>
    %57 = tpu.matmul %56, %54, %cst_22 {dimension_numbers = #tpu.dot_dimension_numbers<[1], [0], [0], [1], [0, 0, 1, 1], [], []>} : vector<64x64xbf16>, vector<64x192xbf16>, vector<64x192xf32> -> vector<64x192xf32>
    %58 = vector.broadcast %55 : vector<1x192xf32> to vector<64x192xf32>
    %59 = arith.addf %57, %58 : vector<64x192xf32>
    %60 = vector.extract_strided_slice %59 {offsets = [0, 0], sizes = [64, 64], strides = [1, 1]} : vector<64x192xf32> to vector<64x64xf32>
    %cst_23 = arith.constant 5.000000e-01 : f32
    %61 = vector.broadcast %cst_23 : f32 to vector<64x64xf32>
    %62 = arith.mulf %61, %60 : vector<64x64xf32>
    %63 = math.tanh %62 : vector<64x64xf32>
    %cst_24 = arith.constant 1.000000e+00 : f32
    %64 = vector.broadcast %cst_24 : f32 to vector<64x64xf32>
    %65 = arith.addf %63, %64 : vector<64x64xf32>
    %cst_25 = arith.constant 5.000000e-01 : f32
    %66 = vector.broadcast %cst_25 : f32 to vector<64x64xf32>
    %67 = arith.mulf %66, %65 : vector<64x64xf32>
    %68 = vector.extract_strided_slice %59 {offsets = [0, 64], sizes = [64, 64], strides = [1, 1]} : vector<64x192xf32> to vector<64x64xf32>
    %69 = math.tanh %68 : vector<64x64xf32>
    %70 = arith.mulf %67, %69 : vector<64x64xf32>
    %71 = vector.extract_strided_slice %59 {offsets = [0, 128], sizes = [64, 64], strides = [1, 1]} : vector<64x192xf32> to vector<64x64xf32>
    %cst_26 = arith.constant 5.000000e-01 : f32
    %72 = vector.broadcast %cst_26 : f32 to vector<64x64xf32>
    %73 = arith.mulf %72, %71 : vector<64x64xf32>
    %74 = math.tanh %73 : vector<64x64xf32>
    %cst_27 = arith.constant 1.000000e+00 : f32
    %75 = vector.broadcast %cst_27 : f32 to vector<64x64xf32>
    %76 = arith.addf %74, %75 : vector<64x64xf32>
    %cst_28 = arith.constant 5.000000e-01 : f32
    %77 = vector.broadcast %cst_28 : f32 to vector<64x64xf32>
    %78 = arith.mulf %77, %76 : vector<64x64xf32>
    %79 = math.tanh %70 : vector<64x64xf32>
    %80 = arith.mulf %78, %79 : vector<64x64xf32>
    %c0_29 = arith.constant 0 : index
    %c0_30 = arith.constant 0 : index
    %81 = vector.load %arg2[%c0_29, %c0_30] : memref<320x128xbf16, #tpu.memory_space<vmem>>, vector<64x128xbf16>
    %82 = arith.truncf %80 : vector<64x64xf32> to vector<64x64xbf16>
    %cst_31 = arith.constant dense<0.000000e+00> : vector<64x128xf32>
    %83 = tpu.matmul %82, %81, %cst_31 {dimension_numbers = #tpu.dot_dimension_numbers<[1], [0], [0], [1], [0, 0, 1, 1], [], []>} : vector<64x64xbf16>, vector<64x128xbf16>, vector<64x128xf32> -> vector<64x128xf32>
    %c3 = arith.constant 3 : index
    %c0_32 = arith.constant 0 : index
    %84 = vector.load %arg3[%c3, %c0_32] : memref<8x192xf32, #tpu.memory_space<vmem>>, vector<1x128xf32>
    %85 = vector.broadcast %84 : vector<1x128xf32> to vector<64x128xf32>
    %86 = arith.addf %83, %85 : vector<64x128xf32>
    %cst_33 = arith.constant 0.000000e+00 : f32
    %87 = vector.broadcast %cst_33 : f32 to vector<64x128xf32>
    %88 = arith.cmpf ogt, %86, %87 : vector<64x128xf32>
    %cst_34 = arith.constant 0.00999999977 : f32
    %89 = vector.broadcast %cst_34 : f32 to vector<64x128xf32>
    %90 = arith.mulf %89, %86 : vector<64x128xf32>
    %91 = arith.select %88, %86, %90 : vector<64x128xi1>, vector<64x128xf32>
    %92 = vector.extract_strided_slice %91 {offsets = [0, 0], sizes = [64, 64], strides = [1, 1]} : vector<64x128xf32> to vector<64x64xf32>
    %c64 = arith.constant 64 : index
    %c0_35 = arith.constant 0 : index
    %93 = vector.load %arg2[%c64, %c0_35] : memref<320x128xbf16, #tpu.memory_space<vmem>>, vector<64x128xbf16>
    %94 = arith.truncf %92 : vector<64x64xf32> to vector<64x64xbf16>
    %cst_36 = arith.constant dense<0.000000e+00> : vector<64x128xf32>
    %95 = tpu.matmul %94, %93, %cst_36 {dimension_numbers = #tpu.dot_dimension_numbers<[1], [0], [0], [1], [0, 0, 1, 1], [], []>} : vector<64x64xbf16>, vector<64x128xbf16>, vector<64x128xf32> -> vector<64x128xf32>
    %c4 = arith.constant 4 : index
    %c0_37 = arith.constant 0 : index
    %96 = vector.load %arg3[%c4, %c0_37] : memref<8x192xf32, #tpu.memory_space<vmem>>, vector<1x128xf32>
    %97 = vector.broadcast %96 : vector<1x128xf32> to vector<64x128xf32>
    %98 = arith.addf %95, %97 : vector<64x128xf32>
    %cst_38 = arith.constant 0.000000e+00 : f32
    %99 = vector.broadcast %cst_38 : f32 to vector<64x128xf32>
    %100 = arith.cmpf ogt, %98, %99 : vector<64x128xf32>
    %cst_39 = arith.constant 0.00999999977 : f32
    %101 = vector.broadcast %cst_39 : f32 to vector<64x128xf32>
    %102 = arith.mulf %101, %98 : vector<64x128xf32>
    %103 = arith.select %100, %98, %102 : vector<64x128xi1>, vector<64x128xf32>
    %104 = vector.extract_strided_slice %103 {offsets = [0, 0], sizes = [64, 64], strides = [1, 1]} : vector<64x128xf32> to vector<64x64xf32>
    %c128_40 = arith.constant 128 : index
    %c0_41 = arith.constant 0 : index
    %105 = vector.load %arg2[%c128_40, %c0_41] : memref<320x128xbf16, #tpu.memory_space<vmem>>, vector<64x128xbf16>
    %106 = arith.truncf %104 : vector<64x64xf32> to vector<64x64xbf16>
    %cst_42 = arith.constant dense<0.000000e+00> : vector<64x128xf32>
    %107 = tpu.matmul %106, %105, %cst_42 {dimension_numbers = #tpu.dot_dimension_numbers<[1], [0], [0], [1], [0, 0, 1, 1], [], []>} : vector<64x64xbf16>, vector<64x128xbf16>, vector<64x128xf32> -> vector<64x128xf32>
    %c5 = arith.constant 5 : index
    %c0_43 = arith.constant 0 : index
    %108 = vector.load %arg3[%c5, %c0_43] : memref<8x192xf32, #tpu.memory_space<vmem>>, vector<1x128xf32>
    %109 = vector.broadcast %108 : vector<1x128xf32> to vector<64x128xf32>
    %110 = arith.addf %107, %109 : vector<64x128xf32>
    %cst_44 = arith.constant 0.000000e+00 : f32
    %111 = vector.broadcast %cst_44 : f32 to vector<64x128xf32>
    %112 = arith.maximumf %110, %111 : vector<64x128xf32>
    %113 = vector.extract_strided_slice %112 {offsets = [0, 0], sizes = [64, 64], strides = [1, 1]} : vector<64x128xf32> to vector<64x64xf32>
    %c192_45 = arith.constant 192 : index
    %c0_46 = arith.constant 0 : index
    %114 = vector.load %arg2[%c192_45, %c0_46] : memref<320x128xbf16, #tpu.memory_space<vmem>>, vector<64x128xbf16>
    %115 = arith.truncf %113 : vector<64x64xf32> to vector<64x64xbf16>
    %cst_47 = arith.constant dense<0.000000e+00> : vector<64x128xf32>
    %116 = tpu.matmul %115, %114, %cst_47 {dimension_numbers = #tpu.dot_dimension_numbers<[1], [0], [0], [1], [0, 0, 1, 1], [], []>} : vector<64x64xbf16>, vector<64x128xbf16>, vector<64x128xf32> -> vector<64x128xf32>
    %c6 = arith.constant 6 : index
    %c0_48 = arith.constant 0 : index
    %117 = vector.load %arg3[%c6, %c0_48] : memref<8x192xf32, #tpu.memory_space<vmem>>, vector<1x128xf32>
    %118 = vector.broadcast %117 : vector<1x128xf32> to vector<64x128xf32>
    %119 = arith.addf %116, %118 : vector<64x128xf32>
    %cst_49 = arith.constant 0.000000e+00 : f32
    %120 = vector.broadcast %cst_49 : f32 to vector<64x128xf32>
    %121 = arith.maximumf %119, %120 : vector<64x128xf32>
    %122 = vector.extract_strided_slice %121 {offsets = [0, 0], sizes = [64, 64], strides = [1, 1]} : vector<64x128xf32> to vector<64x64xf32>
    %c256 = arith.constant 256 : index
    %c0_50 = arith.constant 0 : index
    %123 = vector.load %arg2[%c256, %c0_50] : memref<320x128xbf16, #tpu.memory_space<vmem>>, vector<64x128xbf16>
    %124 = arith.truncf %122 : vector<64x64xf32> to vector<64x64xbf16>
    %cst_51 = arith.constant dense<0.000000e+00> : vector<64x128xf32>
    %125 = tpu.matmul %124, %123, %cst_51 {dimension_numbers = #tpu.dot_dimension_numbers<[1], [0], [0], [1], [0, 0, 1, 1], [], []>} : vector<64x64xbf16>, vector<64x128xbf16>, vector<64x128xf32> -> vector<64x128xf32>
    %c7 = arith.constant 7 : index
    %c0_52 = arith.constant 0 : index
    %126 = vector.load %arg3[%c7, %c0_52] : memref<8x192xf32, #tpu.memory_space<vmem>>, vector<1x128xf32>
    %127 = vector.broadcast %126 : vector<1x128xf32> to vector<64x128xf32>
    %128 = arith.addf %125, %127 : vector<64x128xf32>
    %c0_53 = arith.constant 0 : index
    %c0_54 = arith.constant 0 : index
    %129 = vector.load %arg4[%c0_53, %c0_54] : memref<64x128xf32, #tpu.memory_space<vmem>>, vector<64x128xf32>
    tpu.vector_store %arg4[%c0_53, %c0_54], %128 {strides = array<i32>} : memref<64x128xf32, #tpu.memory_space<vmem>>, vector<64x128xf32>,
    return
  }
}

</mosaic_0001>

<llo_original>
// kernel: tpu_custom_call.1
$region0: #{tpu_custom_call.1}
  #allocation0 [shape = 'u32[]', space=smem, size = 0x4, offset = 0x4, fixed_abs, tag = 'smem constant byte address 0x4 - core index']
  #allocation1 [shape = 'u32[144,128]{1,0:T(1,128)}', space=vmem, size = 0x12000, scoped, tag = 'internal scratch']
  %s0 = inlined_call_operand.vmem [shape: bf16[64,128], index: 0, kind: input, shape index: {}]
  %s1 = inlined_call_operand.vmem [shape: bf16[256,192], index: 1, kind: input, shape index: {}]
  %s2 = inlined_call_operand.vmem [shape: bf16[320,128], index: 2, kind: input, shape index: {}]
  %s3 = inlined_call_operand.vmem [shape: f32[8,192], index: 3, kind: input, shape index: {}]
  %s4 = inlined_call_operand.hbm [shape: f32[64,128], index: 4, kind: output, shape index: {}]
  %s5 = sld [smem:[#allocation0]]
  $region26: #{tpu_custom_call.1} parent=0
    _
  %s7 = ssub.s32 1, %s5
  %s8 = scalar_select 0, %s7, %s5
  $region1: #{tpu_custom_call.1} parent=0
    #allocation2 [shape = 'u8[32768]{0}', space=vmem, size = 0x8000, scoped, tag = 'output window, operand 0, single buffered']
    #allocation3 [shape = 's32[1]{0}', space=sflag, size = 0x4, scoped, tag = 'scoped memory for tpu_custom_call.1']
    %9 = vsyncpa [#allocation3], 0
    // Predicated region
    $region2: #{tpu_custom_call.1} parent=1 // pred_check
      _
    $region3: #{tpu_custom_call.1} parent=1 // pred_check_branch
      %11 = sbr.rel (0) target = $region5
    $region4: #{tpu_custom_call.1} parent=1 // pred_region
      _
    $region5: #{tpu_custom_call.1} parent=1 // pred_fallthru
      _
    // Predicated region
    $region6: #{tpu_custom_call.1} parent=1 // pred_check
      _
    $region7: #{tpu_custom_call.1} parent=1 // pred_check_branch
      %13 = sbr.rel (0) target = $region9
    $region8: #{tpu_custom_call.1} parent=1 // pred_region
      _
    $region9: #{tpu_custom_call.1} parent=1 // pred_fallthru
      _
    // Predicated region
    $region10: #{tpu_custom_call.1} parent=1 // pred_check
      _
    $region11: #{tpu_custom_call.1} parent=1 // pred_check_branch
      %15 = sbr.rel (0) target = $region13
    $region12: #{tpu_custom_call.1} parent=1 // pred_region
      _
    $region13: #{tpu_custom_call.1} parent=1 // pred_fallthru
      _
    // Predicated region
    $region14: #{tpu_custom_call.1} parent=1 // pred_check
      _
    $region15: #{tpu_custom_call.1} parent=1 // pred_check_branch
      %17 = sbr.rel (0) target = $region17
    $region16: #{tpu_custom_call.1} parent=1 // pred_region
      _
    $region17: #{tpu_custom_call.1} parent=1 // pred_fallthru
      _
    %v19 = vld [vmem:[%s0] sm:$0xf]
    %v20 = vld [vmem:[%s0 + $0x4] sm:$0xf]
    %v21 = vld [vmem:[%s0 + $0x8] sm:$0xf]
    %v22 = vld [vmem:[%s0 + $0xc] sm:$0xf]
    %v23 = vld [vmem:[%s0 + $0x10] sm:$0xf]
    %v24 = vld [vmem:[%s0 + $0x14] sm:$0xf]
    %v25 = vld [vmem:[%s0 + $0x18] sm:$0xf]
    %v26 = vld [vmem:[%s0 + $0x1c] sm:$0xf]
    %v27 = vld [vmem:[%s1] sm:$0xff]
    %v28 = vld [vmem:[%s1 + $0x8] sm:$0xff]
    %v29 = vld [vmem:[%s1 + $0x10] sm:$0xff]
    %v30 = vld [vmem:[%s1 + $0x18] sm:$0xff]
    %v31 = vld [vmem:[%s1 + $0x20] sm:$0xff]
    %v32 = vld [vmem:[%s1 + $0x28] sm:$0xff]
    %v33 = vld [vmem:[%s1 + $0x30] sm:$0xff]
    %v34 = vld [vmem:[%s1 + $0x38] sm:$0xff]
    %v35 = vld [vmem:[%s1 + $0x40] sm:$0xff]
    %v36 = vld [vmem:[%s1 + $0x48] sm:$0xff]
    %v37 = vld [vmem:[%s1 + $0x50] sm:$0xff]
    %v38 = vld [vmem:[%s1 + $0x58] sm:$0xff]
    %v39 = vld [vmem:[%s1 + $0x60] sm:$0xff]
    %v40 = vld [vmem:[%s1 + $0x68] sm:$0xff]
    %v41 = vld [vmem:[%s1 + $0x70] sm:$0xff]
    %v42 = vld [vmem:[%s1 + $0x78] sm:$0xff]
    %v43 = vld [vmem:[%s3] ss:$8 sm:$0x3]
    %v45 = vlaneseq
    %v46 = vshrl.u32 %v45, 7
    %v47 = vsub.s32 0, %v46
    %v48 = vrot.slane %v43, %v47
    %v49 = vlaneseq
    %v50 = vshrl.u32 %v49, 7
    %v51 = vsub.s32 1, %v50
    %v52 = vrot.slane %v43, %v51
    %v63 = vunpack.c.l.b16 %v19
    %v64 = vunpack.c.l.b16 %v20
    %v65 = vunpack.c.l.b16 %v21
    %v66 = vunpack.c.l.b16 %v22
    %v67 = vunpack.c.l.b16 %v23
    %v68 = vunpack.c.l.b16 %v24
    %v69 = vunpack.c.l.b16 %v25
    %v70 = vunpack.c.l.b16 %v26
    %v71 = vpack.c.b16 %v64, %v63
    %v72 = vpack.c.b16 %v66, %v65
    %v73 = vpack.c.b16 %v68, %v67
    %v74 = vpack.c.b16 %v70, %v69
    %v95 = vunpack.c.l.b16 %v27
    %v96 = vunpack.c.h.b16 %v27
    %v97 = vunpack.c.l.b16 %v28
    %v98 = vunpack.c.h.b16 %v28
    %v99 = vunpack.c.l.b16 %v29
    %v100 = vunpack.c.h.b16 %v29
    %v101 = vunpack.c.l.b16 %v30
    %v102 = vunpack.c.h.b16 %v30
    %v103 = vunpack.c.l.b16 %v31
    %v104 = vunpack.c.h.b16 %v31
    %v105 = vunpack.c.l.b16 %v32
    %v106 = vunpack.c.h.b16 %v32
    %v107 = vunpack.c.l.b16 %v33
    %v108 = vunpack.c.h.b16 %v33
    %v109 = vunpack.c.l.b16 %v34
    %v110 = vunpack.c.h.b16 %v34
    %v111 = vunpack.c.l.b16 %v35
    %v112 = vunpack.c.h.b16 %v35
    %v113 = vunpack.c.l.b16 %v36
    %v114 = vunpack.c.h.b16 %v36
    %v115 = vunpack.c.l.b16 %v37
    %v116 = vunpack.c.h.b16 %v37
    %v117 = vunpack.c.l.b16 %v38
    %v118 = vunpack.c.h.b16 %v38
    %v119 = vunpack.c.l.b16 %v39
    %v120 = vunpack.c.h.b16 %v39
    %v121 = vunpack.c.l.b16 %v40
    %v122 = vunpack.c.h.b16 %v40
    %v123 = vunpack.c.l.b16 %v41
    %v124 = vunpack.c.h.b16 %v41
    %v125 = vunpack.c.l.b16 %v42
    %v126 = vunpack.c.h.b16 %v42
    %v127 = vpack.c.b16 %v97, %v95
    %v128 = vpack.c.b16 %v98, %v96
    %v129 = vpack.c.b16 %v101, %v99
    %v130 = vpack.c.b16 %v102, %v100
    %v131 = vpack.c.b16 %v105, %v103
    %v132 = vpack.c.b16 %v106, %v104
    %v133 = vpack.c.b16 %v109, %v107
    %v134 = vpack.c.b16 %v110, %v108
    %v135 = vpack.c.b16 %v113, %v111
    %v136 = vpack.c.b16 %v114, %v112
    %v137 = vpack.c.b16 %v117, %v115
    %v138 = vpack.c.b16 %v118, %v116
    %v139 = vpack.c.b16 %v121, %v119
    %v140 = vpack.c.b16 %v122, %v120
    %v141 = vpack.c.b16 %v125, %v123
    %v142 = vpack.c.b16 %v126, %v124
    %159 = vmatprep.subr.bf16.mxu0 %v128
    %160 = vmatpush1.bf16.msra.mxu0 %v127
    %161 = vmatprep.subr.bf16.mxu0 %v130
    %162 = vmatpush1.bf16.msra.mxu0 %v129
    %163 = vmatprep.subr.bf16.mxu0 %v132
    %164 = vmatpush1.bf16.msra.mxu0 %v131
    %165 = vmatprep.subr.bf16.mxu0 %v134
    %166 = vmatpush1.bf16.msra.mxu0 %v133
    %167 = vmatprep.subr.bf16.mxu0 %v136
    %168 = vmatpush1.bf16.msra.mxu0 %v135
    %169 = vmatprep.subr.bf16.mxu0 %v138
    %170 = vmatpush1.bf16.msra.mxu0 %v137
    %171 = vmatprep.subr.bf16.mxu0 %v140
    %172 = vmatpush1.bf16.msra.mxu0 %v139
    %173 = vmatprep.subr.bf16.mxu0 %v142
    %174 = vmatpush1.bf16.msra.mxu0 %v141
    %175 = vmatprep.subr.bf16.mxu0 0
    %176 = vmatpush1.bf16.msra.mxu0 0
    %177 = vmatprep.subr.bf16.mxu0 0
    %178 = vmatpush1.bf16.msra.mxu0 0
    %179 = vmatprep.subr.bf16.mxu0 0
    %180 = vmatpush1.bf16.msra.mxu0 0
    %181 = vmatprep.subr.bf16.mxu0 0
    %182 = vmatpush1.bf16.msra.mxu0 0
    %183 = vmatprep.subr.bf16.mxu0 0
    %184 = vmatpush1.bf16.msra.mxu0 0
    %185 = vmatprep.subr.bf16.mxu0 0
    %186 = vmatpush1.bf16.msra.mxu0 0
    %187 = vmatprep.subr.bf16.mxu0 0
    %188 = vmatpush1.bf16.msra.mxu0 0
    %189 = vmatprep.subr.bf16.mxu0 0
    %190 = vmatpush1.bf16.msra.mxu0 0
    %191 = vmatprep.mubr.bf16.mxu0 0
    %192 = vmatmul.mubr.bf16.gmra.mrb[0].mxu0 %v71
    %v193 = vpop.f32.mrb[0].mxu0
    %v194 = vadd.f32 %v48, %v193
    %v195 = vpop.f32.mrb[0].mxu0
    %v196 = vadd.f32 %v52, %v195
    %v197 = vpop.f32.mrb[0].mxu0
    %v198 = vadd.f32 %v48, %v197
    %v199 = vpop.f32.mrb[0].mxu0
    %v200 = vadd.f32 %v52, %v199
    %201 = vmatprep.mubr.bf16.mxu0 0
    %202 = vmatmul.mubr.bf16.gmra.mrb[0].mxu0 %v72
    %v203 = vpop.f32.mrb[0].mxu0
    %v204 = vadd.f32 %v48, %v203
    %v205 = vpop.f32.mrb[0].mxu0
    %v206 = vadd.f32 %v52, %v205
    %v207 = vpop.f32.mrb[0].mxu0
    %v208 = vadd.f32 %v48, %v207
    %v209 = vpop.f32.mrb[0].mxu0
    %v210 = vadd.f32 %v52, %v209
    %211 = vmatprep.mubr.bf16.mxu0 0
    %212 = vmatmul.mubr.bf16.gmra.mrb[0].mxu0 %v73
    %v213 = vpop.f32.mrb[0].mxu0
    %v214 = vadd.f32 %v48, %v213
    %v215 = vpop.f32.mrb[0].mxu0
    %v216 = vadd.f32 %v52, %v215
    %v217 = vpop.f32.mrb[0].mxu0
    %v218 = vadd.f32 %v48, %v217
    %v219 = vpop.f32.mrb[0].mxu0
    %v220 = vadd.f32 %v52, %v219
    %221 = vmatprep.mubr.bf16.mxu0 0
    %222 = vmatmul.mubr.bf16.gmra.mrb[0].mxu0 %v74
    %v223 = vpop.f32.mrb[0].mxu0
    %v224 = vadd.f32 %v48, %v223
    %v225 = vpop.f32.mrb[0].mxu0
    %v226 = vadd.f32 %v52, %v225
    %v227 = vpop.f32.mrb[0].mxu0
    %v228 = vadd.f32 %v48, %v227
    %v229 = vpop.f32.mrb[0].mxu0
    %v230 = vadd.f32 %v52, %v229
    %231 = vdwg.mxu0
    %v232 = vmul.f32 %v194, 0.5
    %v233 = vmul.f32 %v198, 0.5
    %v234 = vmul.f32 %v204, 0.5
    %v235 = vmul.f32 %v208, 0.5
    %v236 = vmul.f32 %v214, 0.5
    %v237 = vmul.f32 %v218, 0.5
    %v238 = vmul.f32 %v224, 0.5
    %v239 = vmul.f32 %v228, 0.5
    %v240 = vtanh.pop %v232
    %v241 = vtanh.pop %v233
    %v242 = vtanh.pop %v234
    %v243 = vtanh.pop %v235
    %v244 = vtanh.pop %v236
    %v245 = vtanh.pop %v237
    %v246 = vtanh.pop %v238
    %v247 = vtanh.pop %v239
    %v248 = vadd.f32 %v240, 1.0
    %v249 = vadd.f32 %v241, 1.0
    %v250 = vadd.f32 %v242, 1.0
    %v251 = vadd.f32 %v243, 1.0
    %v252 = vadd.f32 %v244, 1.0
    %v253 = vadd.f32 %v245, 1.0
    %v254 = vadd.f32 %v246, 1.0
    %v255 = vadd.f32 %v247, 1.0
    %v256 = vmul.f32 %v248, 0.5
    %v257 = vmul.f32 %v249, 0.5
    %v258 = vmul.f32 %v250, 0.5
    %v259 = vmul.f32 %v251, 0.5
    %v260 = vmul.f32 %v252, 0.5
    %v261 = vmul.f32 %v253, 0.5
    %v262 = vmul.f32 %v254, 0.5
    %v263 = vmul.f32 %v255, 0.5
    %v264 = vtanh.pop %v194
    %v265 = vtanh.pop %v198
    %v266 = vtanh.pop %v204
    %v267 = vtanh.pop %v208
    %v268 = vtanh.pop %v214
    %v269 = vtanh.pop %v218
    %v270 = vtanh.pop %v224
    %v271 = vtanh.pop %v228
    %280 = vrot.lane.b32.xlu0 %v264, 64
    %v281 = vpop.permute.xlu0 %280
    %282 = vrot.lane.b32.xlu0 %v265, 64
    %v283 = vpop.permute.xlu0 %282
    %284 = vrot.lane.b32.xlu0 %v266, 64
    %v285 = vpop.permute.xlu0 %284
    %286 = vrot.lane.b32.xlu0 %v267, 64
    %v287 = vpop.permute.xlu0 %286
    %288 = vrot.lane.b32.xlu0 %v268, 64
    %v289 = vpop.permute.xlu0 %288
    %290 = vrot.lane.b32.xlu0 %v269, 64
    %v291 = vpop.permute.xlu0 %290
    %292 = vrot.lane.b32.xlu0 %v270, 64
    %v293 = vpop.permute.xlu0 %292
    %294 = vrot.lane.b32.xlu0 %v271, 64
    %v295 = vpop.permute.xlu0 %294
    %v304 = vmul.f32 %v256, %v281
    %v305 = vmul.f32 %v257, %v283
    %v306 = vmul.f32 %v258, %v285
    %v307 = vmul.f32 %v259, %v287
    %v308 = vmul.f32 %v260, %v289
    %v309 = vmul.f32 %v261, %v291
    %v310 = vmul.f32 %v262, %v293
    %v311 = vmul.f32 %v263, %v295
    %v312 = vmul.f32 %v196, 0.5
    %v313 = vmul.f32 %v200, 0.5
    %v314 = vmul.f32 %v206, 0.5
    %v315 = vmul.f32 %v210, 0.5
    %v316 = vmul.f32 %v216, 0.5
    %v317 = vmul.f32 %v220, 0.5
    %v318 = vmul.f32 %v226, 0.5
    %v319 = vmul.f32 %v230, 0.5
    %v320 = vtanh.pop %v312
    %v321 = vtanh.pop %v313
    %v322 = vtanh.pop %v314
    %v323 = vtanh.pop %v315
    %v324 = vtanh.pop %v316
    %v325 = vtanh.pop %v317
    %v326 = vtanh.pop %v318
    %v327 = vtanh.pop %v319
    %v328 = vadd.f32 %v320, 1.0
    %v329 = vadd.f32 %v321, 1.0
    %v330 = vadd.f32 %v322, 1.0
    %v331 = vadd.f32 %v323, 1.0
    %v332 = vadd.f32 %v324, 1.0
    %v333 = vadd.f32 %v325, 1.0
    %v334 = vadd.f32 %v326, 1.0
    %v335 = vadd.f32 %v327, 1.0
    %v336 = vmul.f32 %v328, 0.5
    %v337 = vmul.f32 %v329, 0.5
    %v338 = vmul.f32 %v330, 0.5
    %v339 = vmul.f32 %v331, 0.5
    %v340 = vmul.f32 %v332, 0.5
    %v341 = vmul.f32 %v333, 0.5
    %v342 = vmul.f32 %v334, 0.5
    %v343 = vmul.f32 %v335, 0.5
    %v344 = vtanh.pop %v304
    %v345 = vtanh.pop %v305
    %v346 = vtanh.pop %v306
    %v347 = vtanh.pop %v307
    %v348 = vtanh.pop %v308
    %v349 = vtanh.pop %v309
    %v350 = vtanh.pop %v310
    %v351 = vtanh.pop %v311
    %v352 = vmul.f32 %v336, %v344
    %v353 = vmul.f32 %v337, %v345
    %v354 = vmul.f32 %v338, %v346
    %v355 = vmul.f32 %v339, %v347
    %v356 = vmul.f32 %v340, %v348
    %v357 = vmul.f32 %v341, %v349
    %v358 = vmul.f32 %v342, %v350
    %v359 = vmul.f32 %v343, %v351
    %v360 = vld [vmem:[%s1 + $0x80] sm:$0xff]
    %v361 = vld [vmem:[%s1 + $0x88] sm:$0xff]
    %v362 = vld [vmem:[%s1 + $0x90] sm:$0xff]
    %v363 = vld [vmem:[%s1 + $0x98] sm:$0xff]
    %v364 = vld [vmem:[%s1 + $0xa0] sm:$0xff]
    %v365 = vld [vmem:[%s1 + $0xa8] sm:$0xff]
    %v366 = vld [vmem:[%s1 + $0xb0] sm:$0xff]
    %v367 = vld [vmem:[%s1 + $0xb8] sm:$0xff]
    %s368 = scalar_lea.vmem %s3, 1
    %v369 = vld [vmem:[%s368] ss:$8 sm:$0x3]
    %v370 = vpack.c.bf16 %v353, %v352
    %v371 = vpack.c.bf16 %v355, %v354
    %v372 = vpack.c.bf16 %v357, %v356
    %v373 = vpack.c.bf16 %v359, %v358
    %v375 = vlaneseq
    %v376 = vshrl.u32 %v375, 7
    %v377 = vsub.s32 0, %v376
    %v378 = vrot.slane %v369, %v377
    %v379 = vlaneseq
    %v380 = vshrl.u32 %v379, 7
    %v381 = vsub.s32 1, %v380
    %v382 = vrot.slane %v369, %v381
    %v393 = vunpack.c.l.b16 %v360
    %v394 = vunpack.c.h.b16 %v360
    %v395 = vunpack.c.l.b16 %v361
    %v396 = vunpack.c.h.b16 %v361
    %v397 = vunpack.c.l.b16 %v362
    %v398 = vunpack.c.h.b16 %v362
    %v399 = vunpack.c.l.b16 %v363
    %v400 = vunpack.c.h.b16 %v363
    %v401 = vunpack.c.l.b16 %v364
    %v402 = vunpack.c.h.b16 %v364
    %v403 = vunpack.c.l.b16 %v365
    %v404 = vunpack.c.h.b16 %v365
    %v405 = vunpack.c.l.b16 %v366
    %v406 = vunpack.c.h.b16 %v366
    %v407 = vunpack.c.l.b16 %v367
    %v408 = vunpack.c.h.b16 %v367
    %v409 = vpack.c.b16 %v395, %v393
    %v410 = vpack.c.b16 %v396, %v394
    %v411 = vpack.c.b16 %v399, %v397
    %v412 = vpack.c.b16 %v400, %v398
    %v413 = vpack.c.b16 %v403, %v401
    %v414 = vpack.c.b16 %v404, %v402
    %v415 = vpack.c.b16 %v407, %v405
    %v416 = vpack.c.b16 %v408, %v406
    %vm425 = vcmask 523264
    %v427 = vsel %vm425, %v370, 0
    %v430 = vsel %vm425, %v371, 0
    %v433 = vsel %vm425, %v372, 0
    %v436 = vsel %vm425, %v373, 0
    %438 = vmatprep.subr.bf16.mxu0 %v410
    %439 = vmatpush1.bf16.msra.mxu0 %v409
    %440 = vmatprep.subr.bf16.mxu0 %v412
    %441 = vmatpush1.bf16.msra.mxu0 %v411
    %442 = vmatprep.subr.bf16.mxu0 %v414
    %443 = vmatpush1.bf16.msra.mxu0 %v413
    %444 = vmatprep.subr.bf16.mxu0 %v416
    %445 = vmatpush1.bf16.msra.mxu0 %v415
    %446 = vmatprep.subr.bf16.mxu0 0
    %447 = vmatpush1.bf16.msra.mxu0 0
    %448 = vmatprep.subr.bf16.mxu0 0
    %449 = vmatpush1.bf16.msra.mxu0 0
    %450 = vmatprep.subr.bf16.mxu0 0
    %451 = vmatpush1.bf16.msra.mxu0 0
    %452 = vmatprep.subr.bf16.mxu0 0
    %453 = vmatpush1.bf16.msra.mxu0 0
    %454 = vmatprep.subr.bf16.mxu0 0
    %455 = vmatpush1.bf16.msra.mxu0 0
    %456 = vmatprep.subr.bf16.mxu0 0
    %457 = vmatpush1.bf16.msra.mxu0 0
    %458 = vmatprep.subr.bf16.mxu0 0
    %459 = vmatpush1.bf16.msra.mxu0 0
    %460 = vmatprep.subr.bf16.mxu0 0
    %461 = vmatpush1.bf16.msra.mxu0 0
    %462 = vmatprep.subr.bf16.mxu0 0
    %463 = vmatpush1.bf16.msra.mxu0 0
    %464 = vmatprep.subr.bf16.mxu0 0
    %465 = vmatpush1.bf16.msra.mxu0 0
    %466 = vmatprep.subr.bf16.mxu0 0
    %467 = vmatpush1.bf16.msra.mxu0 0
    %468 = vmatprep.subr.bf16.mxu0 0
    %469 = vmatpush1.bf16.msra.mxu0 0
    %470 = vmatprep.mubr.bf16.mxu0 0
    %471 = vmatmul.mubr.bf16.gmra.mrb[0].mxu0 %v427
    %v472 = vpop.f32.mrb[0].mxu0
    %v473 = vadd.f32 %v378, %v472
    %v474 = vpop.f32.mrb[0].mxu0
    %v475 = vadd.f32 %v382, %v474
    %v476 = vpop.f32.mrb[0].mxu0
    %v477 = vadd.f32 %v378, %v476
    %v478 = vpop.f32.mrb[0].mxu0
    %v479 = vadd.f32 %v382, %v478
    %480 = vmatprep.mubr.bf16.mxu0 0
    %481 = vmatmul.mubr.bf16.gmra.mrb[0].mxu0 %v430
    %v482 = vpop.f32.mrb[0].mxu0
    %v483 = vadd.f32 %v378, %v482
    %v484 = vpop.f32.mrb[0].mxu0
    %v485 = vadd.f32 %v382, %v484
    %v486 = vpop.f32.mrb[0].mxu0
    %v487 = vadd.f32 %v378, %v486
    %v488 = vpop.f32.mrb[0].mxu0
    %v489 = vadd.f32 %v382, %v488
    %490 = vmatprep.mubr.bf16.mxu0 0
    %491 = vmatmul.mubr.bf16.gmra.mrb[0].mxu0 %v433
    %v492 = vpop.f32.mrb[0].mxu0
    %v493 = vadd.f32 %v378, %v492
    %v494 = vpop.f32.mrb[0].mxu0
    %v495 = vadd.f32 %v382, %v494
    %v496 = vpop.f32.mrb[0].mxu0
    %v497 = vadd.f32 %v378, %v496
    %v498 = vpop.f32.mrb[0].mxu0
    %v499 = vadd.f32 %v382, %v498
    %500 = vmatprep.mubr.bf16.mxu0 0
    %501 = vmatmul.mubr.bf16.gmra.mrb[0].mxu0 %v436
    %v502 = vpop.f32.mrb[0].mxu0
    %v503 = vadd.f32 %v378, %v502
    %v504 = vpop.f32.mrb[0].mxu0
    %v505 = vadd.f32 %v382, %v504
    %v506 = vpop.f32.mrb[0].mxu0
    %v507 = vadd.f32 %v378, %v506
    %v508 = vpop.f32.mrb[0].mxu0
    %v509 = vadd.f32 %v382, %v508
    %510 = vdwg.mxu0
    %v511 = vmul.f32 %v473, 0.5
    %v512 = vmul.f32 %v477, 0.5
    %v513 = vmul.f32 %v483, 0.5
    %v514 = vmul.f32 %v487, 0.5
    %v515 = vmul.f32 %v493, 0.5
    %v516 = vmul.f32 %v497, 0.5
    %v517 = vmul.f32 %v503, 0.5
    %v518 = vmul.f32 %v507, 0.5
    %v519 = vtanh.pop %v511
    %v520 = vtanh.pop %v512
    %v521 = vtanh.pop %v513
    %v522 = vtanh.pop %v514
    %v523 = vtanh.pop %v515
    %v524 = vtanh.pop %v516
    %v525 = vtanh.pop %v517
    %v526 = vtanh.pop %v518
    %v527 = vadd.f32 %v519, 1.0
    %v528 = vadd.f32 %v520, 1.0
    %v529 = vadd.f32 %v521, 1.0
    %v530 = vadd.f32 %v522, 1.0
    %v531 = vadd.f32 %v523, 1.0
    %v532 = vadd.f32 %v524, 1.0
    %v533 = vadd.f32 %v525, 1.0
    %v534 = vadd.f32 %v526, 1.0
    %v535 = vmul.f32 %v527, 0.5
    %v536 = vmul.f32 %v528, 0.5
    %v537 = vmul.f32 %v529, 0.5
    %v538 = vmul.f32 %v530, 0.5
    %v539 = vmul.f32 %v531, 0.5
    %v540 = vmul.f32 %v532, 0.5
    %v541 = vmul.f32 %v533, 0.5
    %v542 = vmul.f32 %v534, 0.5
    %v543 = vtanh.pop %v473
    %v544 = vtanh.pop %v477
    %v545 = vtanh.pop %v483
    %v546 = vtanh.pop %v487
    %v547 = vtanh.pop %v493
    %v548 = vtanh.pop %v497
    %v549 = vtanh.pop %v503
    %v550 = vtanh.pop %v507
    %559 = vrot.lane.b32.xlu0 %v543, 64
    %v560 = vpop.permute.xlu0 %559
    %561 = vrot.lane.b32.xlu0 %v544, 64
    %v562 = vpop.permute.xlu0 %561
    %563 = vrot.lane.b32.xlu0 %v545, 64
    %v564 = vpop.permute.xlu0 %563
    %565 = vrot.lane.b32.xlu0 %v546, 64
    %v566 = vpop.permute.xlu0 %565
    %567 = vrot.lane.b32.xlu0 %v547, 64
    %v568 = vpop.permute.xlu0 %567
    %569 = vrot.lane.b32.xlu0 %v548, 64
    %v570 = vpop.permute.xlu0 %569
    %571 = vrot.lane.b32.xlu0 %v549, 64
    %v572 = vpop.permute.xlu0 %571
    %573 = vrot.lane.b32.xlu0 %v550, 64
    %v574 = vpop.permute.xlu0 %573
    %v583 = vmul.f32 %v535, %v560
    %v584 = vmul.f32 %v536, %v562
    %v585 = vmul.f32 %v537, %v564
    %v586 = vmul.f32 %v538, %v566
    %v587 = vmul.f32 %v539, %v568
    %v588 = vmul.f32 %v540, %v570
    %v589 = vmul.f32 %v541, %v572
    %v590 = vmul.f32 %v542, %v574
    %v591 = vmul.f32 %v475, 0.5
    %v592 = vmul.f32 %v479, 0.5
    %v593 = vmul.f32 %v485, 0.5
    %v594 = vmul.f32 %v489, 0.5
    %v595 = vmul.f32 %v495, 0.5
    %v596 = vmul.f32 %v499, 0.5
    %v597 = vmul.f32 %v505, 0.5
    %v598 = vmul.f32 %v509, 0.5
    %v599 = vtanh.pop %v591
    %v600 = vtanh.pop %v592
    %v601 = vtanh.pop %v593
    %v602 = vtanh.pop %v594
    %v603 = vtanh.pop %v595
    %v604 = vtanh.pop %v596
    %v605 = vtanh.pop %v597
    %v606 = vtanh.pop %v598
    %v607 = vadd.f32 %v599, 1.0
    %v608 = vadd.f32 %v600, 1.0
    %v609 = vadd.f32 %v601, 1.0
    %v610 = vadd.f32 %v602, 1.0
    %v611 = vadd.f32 %v603, 1.0
    %v612 = vadd.f32 %v604, 1.0
    %v613 = vadd.f32 %v605, 1.0
    %v614 = vadd.f32 %v606, 1.0
    %v615 = vmul.f32 %v607, 0.5
    %v616 = vmul.f32 %v608, 0.5
    %v617 = vmul.f32 %v609, 0.5
    %v618 = vmul.f32 %v610, 0.5
    %v619 = vmul.f32 %v611, 0.5
    %v620 = vmul.f32 %v612, 0.5
    %v621 = vmul.f32 %v613, 0.5
    %v622 = vmul.f32 %v614, 0.5
    %v623 = vtanh.pop %v583
    %v624 = vtanh.pop %v584
    %v625 = vtanh.pop %v585
    %v626 = vtanh.pop %v586
    %v627 = vtanh.pop %v587
    %v628 = vtanh.pop %v588
    %v629 = vtanh.pop %v589
    %v630 = vtanh.pop %v590
    %v631 = vmul.f32 %v615, %v623
    %v632 = vmul.f32 %v616, %v624
    %v633 = vmul.f32 %v617, %v625
    %v634 = vmul.f32 %v618, %v626
    %v635 = vmul.f32 %v619, %v627
    %v636 = vmul.f32 %v620, %v628
    %v637 = vmul.f32 %v621, %v629
    %v638 = vmul.f32 %v622, %v630
    %v639 = vld [vmem:[%s1 + $0xc0] sm:$0xff]
    %v640 = vld [vmem:[%s1 + $0xc8] sm:$0xff]
    %v641 = vld [vmem:[%s1 + $0xd0] sm:$0xff]
    %v642 = vld [vmem:[%s1 + $0xd8] sm:$0xff]
    %v643 = vld [vmem:[%s1 + $0xe0] sm:$0xff]
    %v644 = vld [vmem:[%s1 + $0xe8] sm:$0xff]
    %v645 = vld [vmem:[%s1 + $0xf0] sm:$0xff]
    %v646 = vld [vmem:[%s1 + $0xf8] sm:$0xff]
    %s647 = scalar_lea.vmem %s3, 2
    %v648 = vld [vmem:[%s647] ss:$8 sm:$0x3]
    %v649 = vpack.c.bf16 %v632, %v631
    %v650 = vpack.c.bf16 %v634, %v633
    %v651 = vpack.c.bf16 %v636, %v635
    %v652 = vpack.c.bf16 %v638, %v637
    %v654 = vlaneseq
    %v655 = vshrl.u32 %v654, 7
    %v656 = vsub.s32 0, %v655
    %v657 = vrot.slane %v648, %v656
    %v658 = vlaneseq
    %v659 = vshrl.u32 %v658, 7
    %v660 = vsub.s32 1, %v659
    %v661 = vrot.slane %v648, %v660
    %v672 = vunpack.c.l.b16 %v639
    %v673 = vunpack.c.h.b16 %v639
    %v674 = vunpack.c.l.b16 %v640
    %v675 = vunpack.c.h.b16 %v640
    %v676 = vunpack.c.l.b16 %v641
    %v677 = vunpack.c.h.b16 %v641
    %v678 = vunpack.c.l.b16 %v642
    %v679 = vunpack.c.h.b16 %v642
    %v680 = vunpack.c.l.b16 %v643
    %v681 = vunpack.c.h.b16 %v643
    %v682 = vunpack.c.l.b16 %v644
    %v683 = vunpack.c.h.b16 %v644
    %v684 = vunpack.c.l.b16 %v645
    %v685 = vunpack.c.h.b16 %v645
    %v686 = vunpack.c.l.b16 %v646
    %v687 = vunpack.c.h.b16 %v646
    %v688 = vpack.c.b16 %v674, %v672
    %v689 = vpack.c.b16 %v675, %v673
    %v690 = vpack.c.b16 %v678, %v676
    %v691 = vpack.c.b16 %v679, %v677
    %v692 = vpack.c.b16 %v682, %v680
    %v693 = vpack.c.b16 %v683, %v681
    %v694 = vpack.c.b16 %v686, %v684
    %v695 = vpack.c.b16 %v687, %v685
    %v705 = vsel %vm425, %v649, 0
    %v708 = vsel %vm425, %v650, 0
    %v711 = vsel %vm425, %v651, 0
    %v714 = vsel %vm425, %v652, 0
    %716 = vmatprep.subr.bf16.mxu0 %v689
    %717 = vmatpush1.bf16.msra.mxu0 %v688
    %718 = vmatprep.subr.bf16.mxu0 %v691
    %719 = vmatpush1.bf16.msra.mxu0 %v690
    %720 = vmatprep.subr.bf16.mxu0 %v693
    %721 = vmatpush1.bf16.msra.mxu0 %v692
    %722 = vmatprep.subr.bf16.mxu0 %v695
    %723 = vmatpush1.bf16.msra.mxu0 %v694
    %724 = vmatprep.subr.bf16.mxu0 0
    %725 = vmatpush1.bf16.msra.mxu0 0
    %726 = vmatprep.subr.bf16.mxu0 0
    %727 = vmatpush1.bf16.msra.mxu0 0
    %728 = vmatprep.subr.bf16.mxu0 0
    %729 = vmatpush1.bf16.msra.mxu0 0
    %730 = vmatprep.subr.bf16.mxu0 0
    %731 = vmatpush1.bf16.msra.mxu0 0
    %732 = vmatprep.subr.bf16.mxu0 0
    %733 = vmatpush1.bf16.msra.mxu0 0
    %734 = vmatprep.subr.bf16.mxu0 0
    %735 = vmatpush1.bf16.msra.mxu0 0
    %736 = vmatprep.subr.bf16.mxu0 0
    %737 = vmatpush1.bf16.msra.mxu0 0
    %738 = vmatprep.subr.bf16.mxu0 0
    %739 = vmatpush1.bf16.msra.mxu0 0
    %740 = vmatprep.subr.bf16.mxu0 0
    %741 = vmatpush1.bf16.msra.mxu0 0
    %742 = vmatprep.subr.bf16.mxu0 0
    %743 = vmatpush1.bf16.msra.mxu0 0
    %744 = vmatprep.subr.bf16.mxu0 0
    %745 = vmatpush1.bf16.msra.mxu0 0
    %746 = vmatprep.subr.bf16.mxu0 0
    %747 = vmatpush1.bf16.msra.mxu0 0
    %748 = vmatprep.mubr.bf16.mxu0 0
    %749 = vmatmul.mubr.bf16.gmra.mrb[0].mxu0 %v705
    %v750 = vpop.f32.mrb[0].mxu0
    %v751 = vadd.f32 %v657, %v750
    %v752 = vpop.f32.mrb[0].mxu0
    %v753 = vadd.f32 %v661, %v752
    %v754 = vpop.f32.mrb[0].mxu0
    %v755 = vadd.f32 %v657, %v754
    %v756 = vpop.f32.mrb[0].mxu0
    %v757 = vadd.f32 %v661, %v756
    %758 = vmatprep.mubr.bf16.mxu0 0
    %759 = vmatmul.mubr.bf16.gmra.mrb[0].mxu0 %v708
    %v760 = vpop.f32.mrb[0].mxu0
    %v761 = vadd.f32 %v657, %v760
    %v762 = vpop.f32.mrb[0].mxu0
    %v763 = vadd.f32 %v661, %v762
    %v764 = vpop.f32.mrb[0].mxu0
    %v765 = vadd.f32 %v657, %v764
    %v766 = vpop.f32.mrb[0].mxu0
    %v767 = vadd.f32 %v661, %v766
    %768 = vmatprep.mubr.bf16.mxu0 0
    %769 = vmatmul.mubr.bf16.gmra.mrb[0].mxu0 %v711
    %v770 = vpop.f32.mrb[0].mxu0
    %v771 = vadd.f32 %v657, %v770
    %v772 = vpop.f32.mrb[0].mxu0
    %v773 = vadd.f32 %v661, %v772
    %v774 = vpop.f32.mrb[0].mxu0
    %v775 = vadd.f32 %v657, %v774
    %v776 = vpop.f32.mrb[0].mxu0
    %v777 = vadd.f32 %v661, %v776
    %778 = vmatprep.mubr.bf16.mxu0 0
    %779 = vmatmul.mubr.bf16.gmra.mrb[0].mxu0 %v714
    %v780 = vpop.f32.mrb[0].mxu0
    %v781 = vadd.f32 %v657, %v780
    %v782 = vpop.f32.mrb[0].mxu0
    %v783 = vadd.f32 %v661, %v782
    %v784 = vpop.f32.mrb[0].mxu0
    %v785 = vadd.f32 %v657, %v784
    %v786 = vpop.f32.mrb[0].mxu0
    %v787 = vadd.f32 %v661, %v786
    %788 = vdwg.mxu0
    %v789 = vmul.f32 %v751, 0.5
    %v790 = vmul.f32 %v755, 0.5
    %v791 = vmul.f32 %v761, 0.5
    %v792 = vmul.f32 %v765, 0.5
    %v793 = vmul.f32 %v771, 0.5
    %v794 = vmul.f32 %v775, 0.5
    %v795 = vmul.f32 %v781, 0.5
    %v796 = vmul.f32 %v785, 0.5
    %v797 = vtanh.pop %v789
    %v798 = vtanh.pop %v790
    %v799 = vtanh.pop %v791
    %v800 = vtanh.pop %v792
    %v801 = vtanh.pop %v793
    %v802 = vtanh.pop %v794
    %v803 = vtanh.pop %v795
    %v804 = vtanh.pop %v796
    %v805 = vadd.f32 %v797, 1.0
    %v806 = vadd.f32 %v798, 1.0
    %v807 = vadd.f32 %v799, 1.0
    %v808 = vadd.f32 %v800, 1.0
    %v809 = vadd.f32 %v801, 1.0
    %v810 = vadd.f32 %v802, 1.0
    %v811 = vadd.f32 %v803, 1.0
    %v812 = vadd.f32 %v804, 1.0
    %v813 = vmul.f32 %v805, 0.5
    %v814 = vmul.f32 %v806, 0.5
    %v815 = vmul.f32 %v807, 0.5
    %v816 = vmul.f32 %v808, 0.5
    %v817 = vmul.f32 %v809, 0.5
    %v818 = vmul.f32 %v810, 0.5
    %v819 = vmul.f32 %v811, 0.5
    %v820 = vmul.f32 %v812, 0.5
    %v821 = vtanh.pop %v751
    %v822 = vtanh.pop %v755
    %v823 = vtanh.pop %v761
    %v824 = vtanh.pop %v765
    %v825 = vtanh.pop %v771
    %v826 = vtanh.pop %v775
    %v827 = vtanh.pop %v781
    %v828 = vtanh.pop %v785
    %837 = vrot.lane.b32.xlu0 %v821, 64
    %v838 = vpop.permute.xlu0 %837
    %839 = vrot.lane.b32.xlu0 %v822, 64
    %v840 = vpop.permute.xlu0 %839
    %841 = vrot.lane.b32.xlu0 %v823, 64
    %v842 = vpop.permute.xlu0 %841
    %843 = vrot.lane.b32.xlu0 %v824, 64
    %v844 = vpop.permute.xlu0 %843
    %845 = vrot.lane.b32.xlu0 %v825, 64
    %v846 = vpop.permute.xlu0 %845
    %847 = vrot.lane.b32.xlu0 %v826, 64
    %v848 = vpop.permute.xlu0 %847
    %849 = vrot.lane.b32.xlu0 %v827, 64
    %v850 = vpop.permute.xlu0 %849
    %851 = vrot.lane.b32.xlu0 %v828, 64
    %v852 = vpop.permute.xlu0 %851
    %v861 = vmul.f32 %v813, %v838
    %v862 = vmul.f32 %v814, %v840
    %v863 = vmul.f32 %v815, %v842
    %v864 = vmul.f32 %v816, %v844
    %v865 = vmul.f32 %v817, %v846
    %v866 = vmul.f32 %v818, %v848
    %v867 = vmul.f32 %v819, %v850
    %v868 = vmul.f32 %v820, %v852
    %v869 = vmul.f32 %v753, 0.5
    %v870 = vmul.f32 %v757, 0.5
    %v871 = vmul.f32 %v763, 0.5
    %v872 = vmul.f32 %v767, 0.5
    %v873 = vmul.f32 %v773, 0.5
    %v874 = vmul.f32 %v777, 0.5
    %v875 = vmul.f32 %v783, 0.5
    %v876 = vmul.f32 %v787, 0.5
    %v877 = vtanh.pop %v869
    %v878 = vtanh.pop %v870
    %v879 = vtanh.pop %v871
    %v880 = vtanh.pop %v872
    %v881 = vtanh.pop %v873
    %v882 = vtanh.pop %v874
    %v883 = vtanh.pop %v875
    %v884 = vtanh.pop %v876
    %v885 = vadd.f32 %v877, 1.0
    %v886 = vadd.f32 %v878, 1.0
    %v887 = vadd.f32 %v879, 1.0
    %v888 = vadd.f32 %v880, 1.0
    %v889 = vadd.f32 %v881, 1.0
    %v890 = vadd.f32 %v882, 1.0
    %v891 = vadd.f32 %v883, 1.0
    %v892 = vadd.f32 %v884, 1.0
    %v893 = vmul.f32 %v885, 0.5
    %v894 = vmul.f32 %v886, 0.5
    %v895 = vmul.f32 %v887, 0.5
    %v896 = vmul.f32 %v888, 0.5
    %v897 = vmul.f32 %v889, 0.5
    %v898 = vmul.f32 %v890, 0.5
    %v899 = vmul.f32 %v891, 0.5
    %v900 = vmul.f32 %v892, 0.5
    %v901 = vtanh.pop %v861
    %v902 = vtanh.pop %v862
    %v903 = vtanh.pop %v863
    %v904 = vtanh.pop %v864
    %v905 = vtanh.pop %v865
    %v906 = vtanh.pop %v866
    %v907 = vtanh.pop %v867
    %v908 = vtanh.pop %v868
    %v909 = vmul.f32 %v893, %v901
    %v910 = vmul.f32 %v894, %v902
    %v911 = vmul.f32 %v895, %v903
    %v912 = vmul.f32 %v896, %v904
    %v913 = vmul.f32 %v897, %v905
    %v914 = vmul.f32 %v898, %v906
    %v915 = vmul.f32 %v899, %v907
    %v916 = vmul.f32 %v900, %v908
    %v917 = vld [vmem:[%s2] sm:$0xf]
    %v918 = vld [vmem:[%s2 + $0x4] sm:$0xf]
    %v919 = vld [vmem:[%s2 + $0x8] sm:$0xf]
    %v920 = vld [vmem:[%s2 + $0xc] sm:$0xf]
    %v921 = vld [vmem:[%s2 + $0x10] sm:$0xf]
    %v922 = vld [vmem:[%s2 + $0x14] sm:$0xf]
    %v923 = vld [vmem:[%s2 + $0x18] sm:$0xf]
    %v924 = vld [vmem:[%s2 + $0x1c] sm:$0xf]
    %v925 = vpack.c.bf16 %v910, %v909
    %v926 = vpack.c.bf16 %v912, %v911
    %v927 = vpack.c.bf16 %v914, %v913
    %v928 = vpack.c.bf16 %v916, %v915
    %v929 = vld [vmem:[%s3 + $0x3] ss:$0 sm:$0xff]
    %v938 = vunpack.c.l.b16 %v917
    %v939 = vunpack.c.l.b16 %v918
    %v940 = vunpack.c.l.b16 %v919
    %v941 = vunpack.c.l.b16 %v920
    %v942 = vunpack.c.l.b16 %v921
    %v943 = vunpack.c.l.b16 %v922
    %v944 = vunpack.c.l.b16 %v923
    %v945 = vunpack.c.l.b16 %v924
    %v946 = vpack.c.b16 %v939, %v938
    %v947 = vpack.c.b16 %v941, %v940
    %v948 = vpack.c.b16 %v943, %v942
    %v949 = vpack.c.b16 %v945, %v944
    %v955 = vsel %vm425, %v925, 0
    %v958 = vsel %vm425, %v926, 0
    %v961 = vsel %vm425, %v927, 0
    %v964 = vsel %vm425, %v928, 0
    %966 = vmatprep.subr.bf16.mxu0 0
    %967 = vmatpush1.bf16.msra.mxu0 %v946
    %968 = vmatprep.subr.bf16.mxu0 0
    %969 = vmatpush1.bf16.msra.mxu0 %v947
    %970 = vmatprep.subr.bf16.mxu0 0
    %971 = vmatpush1.bf16.msra.mxu0 %v948
    %972 = vmatprep.subr.bf16.mxu0 0
    %973 = vmatpush1.bf16.msra.mxu0 %v949
    %974 = vmatprep.subr.bf16.mxu0 0
    %975 = vmatpush1.bf16.msra.mxu0 0
    %976 = vmatprep.subr.bf16.mxu0 0
    %977 = vmatpush1.bf16.msra.mxu0 0
    %978 = vmatprep.subr.bf16.mxu0 0
    %979 = vmatpush1.bf16.msra.mxu0 0
    %980 = vmatprep.subr.bf16.mxu0 0
    %981 = vmatpush1.bf16.msra.mxu0 0
    %982 = vmatprep.subr.bf16.mxu0 0
    %983 = vmatpush1.bf16.msra.mxu0 0
    %984 = vmatprep.subr.bf16.mxu0 0
    %985 = vmatpush1.bf16.msra.mxu0 0
    %986 = vmatprep.subr.bf16.mxu0 0
    %987 = vmatpush1.bf16.msra.mxu0 0
    %988 = vmatprep.subr.bf16.mxu0 0
    %989 = vmatpush1.bf16.msra.mxu0 0
    %990 = vmatprep.subr.bf16.mxu0 0
    %991 = vmatpush1.bf16.msra.mxu0 0
    %992 = vmatprep.subr.bf16.mxu0 0
    %993 = vmatpush1.bf16.msra.mxu0 0
    %994 = vmatprep.subr.bf16.mxu0 0
    %995 = vmatpush1.bf16.msra.mxu0 0
    %996 = vmatprep.subr.bf16.mxu0 0
    %997 = vmatpush1.bf16.msra.mxu0 0
    %998 = vmatprep.mubr.bf16.mxu0 0
    %999 = vmatmul.mubr.bf16.gmra.mrb[0].mxu0 %v955
    %v1000 = vpop.f32.mrb[0].mxu0
    %v1001 = vadd.f32 %v929, %v1000
    %v1002 = vpop.f32.mrb[0].mxu0
    %v1003 = vpop.f32.mrb[0].mxu0
    %v1004 = vadd.f32 %v929, %v1003
    %v1005 = vpop.f32.mrb[0].mxu0
    %1006 = vmatprep.mubr.bf16.mxu0 0
    %1007 = vmatmul.mubr.bf16.gmra.mrb[0].mxu0 %v958
    %v1008 = vpop.f32.mrb[0].mxu0
    %v1009 = vadd.f32 %v929, %v1008
    %v1010 = vpop.f32.mrb[0].mxu0
    %v1011 = vpop.f32.mrb[0].mxu0
    %v1012 = vadd.f32 %v929, %v1011
    %v1013 = vpop.f32.mrb[0].mxu0
    %1014 = vmatprep.mubr.bf16.mxu0 0
    %1015 = vmatmul.mubr.bf16.gmra.mrb[0].mxu0 %v961
    %v1016 = vpop.f32.mrb[0].mxu0
    %v1017 = vadd.f32 %v929, %v1016
    %v1018 = vpop.f32.mrb[0].mxu0
    %v1019 = vpop.f32.mrb[0].mxu0
    %v1020 = vadd.f32 %v929, %v1019
    %v1021 = vpop.f32.mrb[0].mxu0
    %1022 = vmatprep.mubr.bf16.mxu0 0
    %1023 = vmatmul.mubr.bf16.gmra.mrb[0].mxu0 %v964
    %v1024 = vpop.f32.mrb[0].mxu0
    %v1025 = vadd.f32 %v929, %v1024
    %v1026 = vpop.f32.mrb[0].mxu0
    %v1027 = vpop.f32.mrb[0].mxu0
    %v1028 = vadd.f32 %v929, %v1027
    %v1029 = vpop.f32.mrb[0].mxu0
    %1030 = vdwg.mxu0
    %vm1031 = vcmp.gt.f32.partialorder %v1001, 0.0
    %vm1032 = vcmp.gt.f32.partialorder %v1004, 0.0
    %vm1033 = vcmp.gt.f32.partialorder %v1009, 0.0
    %vm1034 = vcmp.gt.f32.partialorder %v1012, 0.0
    %vm1035 = vcmp.gt.f32.partialorder %v1017, 0.0
    %vm1036 = vcmp.gt.f32.partialorder %v1020, 0.0
    %vm1037 = vcmp.gt.f32.partialorder %v1025, 0.0
    %vm1038 = vcmp.gt.f32.partialorder %v1028, 0.0
    %v1039 = vmul.f32 %v1001, 0.01
    %v1040 = vmul.f32 %v1004, 0.01
    %v1041 = vmul.f32 %v1009, 0.01
    %v1042 = vmul.f32 %v1012, 0.01
    %v1043 = vmul.f32 %v1017, 0.01
    %v1044 = vmul.f32 %v1020, 0.01
    %v1045 = vmul.f32 %v1025, 0.01
    %v1046 = vmul.f32 %v1028, 0.01
    %v1047 = vsel %vm1031, %v1001, %v1039
    %v1048 = vsel %vm1032, %v1004, %v1040
    %v1049 = vsel %vm1033, %v1009, %v1041
    %v1050 = vsel %vm1034, %v1012, %v1042
    %v1051 = vsel %vm1035, %v1017, %v1043
    %v1052 = vsel %vm1036, %v1020, %v1044
    %v1053 = vsel %vm1037, %v1025, %v1045
    %v1054 = vsel %vm1038, %v1028, %v1046
    %v1055 = vld [vmem:[%s2 + $0x20] sm:$0xf]
    %v1056 = vld [vmem:[%s2 + $0x24] sm:$0xf]
    %v1057 = vld [vmem:[%s2 + $0x28] sm:$0xf]
    %v1058 = vld [vmem:[%s2 + $0x2c] sm:$0xf]
    %v1059 = vld [vmem:[%s2 + $0x30] sm:$0xf]
    %v1060 = vld [vmem:[%s2 + $0x34] sm:$0xf]
    %v1061 = vld [vmem:[%s2 + $0x38] sm:$0xf]
    %v1062 = vld [vmem:[%s2 + $0x3c] sm:$0xf]
    %v1063 = vpack.c.bf16 %v1048, %v1047
    %v1064 = vpack.c.bf16 %v1050, %v1049
    %v1065 = vpack.c.bf16 %v1052, %v1051
    %v1066 = vpack.c.bf16 %v1054, %v1053
    %v1067 = vld [vmem:[%s3 + $0x4] ss:$0 sm:$0xff]
    %v1076 = vunpack.c.l.b16 %v1055
    %v1077 = vunpack.c.l.b16 %v1056
    %v1078 = vunpack.c.l.b16 %v1057
    %v1079 = vunpack.c.l.b16 %v1058
    %v1080 = vunpack.c.l.b16 %v1059
    %v1081 = vunpack.c.l.b16 %v1060
    %v1082 = vunpack.c.l.b16 %v1061
    %v1083 = vunpack.c.l.b16 %v1062
    %v1084 = vpack.c.b16 %v1077, %v1076
    %v1085 = vpack.c.b16 %v1079, %v1078
    %v1086 = vpack.c.b16 %v1081, %v1080
    %v1087 = vpack.c.b16 %v1083, %v1082
    %v1093 = vsel %vm425, %v1063, 0
    %v1096 = vsel %vm425, %v1064, 0
    %v1099 = vsel %vm425, %v1065, 0
    %v1102 = vsel %vm425, %v1066, 0
    %1104 = vmatprep.subr.bf16.mxu0 0
    %1105 = vmatpush1.bf16.msra.mxu0 %v1084
    %1106 = vmatprep.subr.bf16.mxu0 0
    %1107 = vmatpush1.bf16.msra.mxu0 %v1085
    %1108 = vmatprep.subr.bf16.mxu0 0
    %1109 = vmatpush1.bf16.msra.mxu0 %v1086
    %1110 = vmatprep.subr.bf16.mxu0 0
    %1111 = vmatpush1.bf16.msra.mxu0 %v1087
    %1112 = vmatprep.subr.bf16.mxu0 0
    %1113 = vmatpush1.bf16.msra.mxu0 0
    %1114 = vmatprep.subr.bf16.mxu0 0
    %1115 = vmatpush1.bf16.msra.mxu0 0
    %1116 = vmatprep.subr.bf16.mxu0 0
    %1117 = vmatpush1.bf16.msra.mxu0 0
    %1118 = vmatprep.subr.bf16.mxu0 0
    %1119 = vmatpush1.bf16.msra.mxu0 0
    %1120 = vmatprep.subr.bf16.mxu0 0
    %1121 = vmatpush1.bf16.msra.mxu0 0
    %1122 = vmatprep.subr.bf16.mxu0 0
    %1123 = vmatpush1.bf16.msra.mxu0 0
    %1124 = vmatprep.subr.bf16.mxu0 0
    %1125 = vmatpush1.bf16.msra.mxu0 0
    %1126 = vmatprep.subr.bf16.mxu0 0
    %1127 = vmatpush1.bf16.msra.mxu0 0
    %1128 = vmatprep.subr.bf16.mxu0 0
    %1129 = vmatpush1.bf16.msra.mxu0 0
    %1130 = vmatprep.subr.bf16.mxu0 0
    %1131 = vmatpush1.bf16.msra.mxu0 0
    %1132 = vmatprep.subr.bf16.mxu0 0
    %1133 = vmatpush1.bf16.msra.mxu0 0
    %1134 = vmatprep.subr.bf16.mxu0 0
    %1135 = vmatpush1.bf16.msra.mxu0 0
    %1136 = vmatprep.mubr.bf16.mxu0 0
    %1137 = vmatmul.mubr.bf16.gmra.mrb[0].mxu0 %v1093
    %v1138 = vpop.f32.mrb[0].mxu0
    %v1139 = vadd.f32 %v1067, %v1138
    %v1140 = vpop.f32.mrb[0].mxu0
    %v1141 = vpop.f32.mrb[0].mxu0
    %v1142 = vadd.f32 %v1067, %v1141
    %v1143 = vpop.f32.mrb[0].mxu0
    %1144 = vmatprep.mubr.bf16.mxu0 0
    %1145 = vmatmul.mubr.bf16.gmra.mrb[0].mxu0 %v1096
    %v1146 = vpop.f32.mrb[0].mxu0
    %v1147 = vadd.f32 %v1067, %v1146
    %v1148 = vpop.f32.mrb[0].mxu0
    %v1149 = vpop.f32.mrb[0].mxu0
    %v1150 = vadd.f32 %v1067, %v1149
    %v1151 = vpop.f32.mrb[0].mxu0
    %1152 = vmatprep.mubr.bf16.mxu0 0
    %1153 = vmatmul.mubr.bf16.gmra.mrb[0].mxu0 %v1099
    %v1154 = vpop.f32.mrb[0].mxu0
    %v1155 = vadd.f32 %v1067, %v1154
    %v1156 = vpop.f32.mrb[0].mxu0
    %v1157 = vpop.f32.mrb[0].mxu0
    %v1158 = vadd.f32 %v1067, %v1157
    %v1159 = vpop.f32.mrb[0].mxu0
    %1160 = vmatprep.mubr.bf16.mxu0 0
    %1161 = vmatmul.mubr.bf16.gmra.mrb[0].mxu0 %v1102
    %v1162 = vpop.f32.mrb[0].mxu0
    %v1163 = vadd.f32 %v1067, %v1162
    %v1164 = vpop.f32.mrb[0].mxu0
    %v1165 = vpop.f32.mrb[0].mxu0
    %v1166 = vadd.f32 %v1067, %v1165
    %v1167 = vpop.f32.mrb[0].mxu0
    %1168 = vdwg.mxu0
    %vm1169 = vcmp.gt.f32.partialorder %v1139, 0.0
    %vm1170 = vcmp.gt.f32.partialorder %v1142, 0.0
    %vm1171 = vcmp.gt.f32.partialorder %v1147, 0.0
    %vm1172 = vcmp.gt.f32.partialorder %v1150, 0.0
    %vm1173 = vcmp.gt.f32.partialorder %v1155, 0.0
    %vm1174 = vcmp.gt.f32.partialorder %v1158, 0.0
    %vm1175 = vcmp.gt.f32.partialorder %v1163, 0.0
    %vm1176 = vcmp.gt.f32.partialorder %v1166, 0.0
    %v1177 = vmul.f32 %v1139, 0.01
    %v1178 = vmul.f32 %v1142, 0.01
    %v1179 = vmul.f32 %v1147, 0.01
    %v1180 = vmul.f32 %v1150, 0.01
    %v1181 = vmul.f32 %v1155, 0.01
    %v1182 = vmul.f32 %v1158, 0.01
    %v1183 = vmul.f32 %v1163, 0.01
    %v1184 = vmul.f32 %v1166, 0.01
    %v1185 = vsel %vm1169, %v1139, %v1177
    %v1186 = vsel %vm1170, %v1142, %v1178
    %v1187 = vsel %vm1171, %v1147, %v1179
    %v1188 = vsel %vm1172, %v1150, %v1180
    %v1189 = vsel %vm1173, %v1155, %v1181
    %v1190 = vsel %vm1174, %v1158, %v1182
    %v1191 = vsel %vm1175, %v1163, %v1183
    %v1192 = vsel %vm1176, %v1166, %v1184
    %v1193 = vld [vmem:[%s2 + $0x40] sm:$0xf]
    %v1194 = vld [vmem:[%s2 + $0x44] sm:$0xf]
    %v1195 = vld [vmem:[%s2 + $0x48] sm:$0xf]
    %v1196 = vld [vmem:[%s2 + $0x4c] sm:$0xf]
    %v1197 = vld [vmem:[%s2 + $0x50] sm:$0xf]
    %v1198 = vld [vmem:[%s2 + $0x54] sm:$0xf]
    %v1199 = vld [vmem:[%s2 + $0x58] sm:$0xf]
    %v1200 = vld [vmem:[%s2 + $0x5c] sm:$0xf]
    %v1201 = vpack.c.bf16 %v1186, %v1185
    %v1202 = vpack.c.bf16 %v1188, %v1187
    %v1203 = vpack.c.bf16 %v1190, %v1189
    %v1204 = vpack.c.bf16 %v1192, %v1191
    %v1205 = vld [vmem:[%s3 + $0x5] ss:$0 sm:$0xff]
    %v1214 = vunpack.c.l.b16 %v1193
    %v1215 = vunpack.c.l.b16 %v1194
    %v1216 = vunpack.c.l.b16 %v1195
    %v1217 = vunpack.c.l.b16 %v1196
    %v1218 = vunpack.c.l.b16 %v1197
    %v1219 = vunpack.c.l.b16 %v1198
    %v1220 = vunpack.c.l.b16 %v1199
    %v1221 = vunpack.c.l.b16 %v1200
    %v1222 = vpack.c.b16 %v1215, %v1214
    %v1223 = vpack.c.b16 %v1217, %v1216
    %v1224 = vpack.c.b16 %v1219, %v1218
    %v1225 = vpack.c.b16 %v1221, %v1220
    %v1231 = vsel %vm425, %v1201, 0
    %v1234 = vsel %vm425, %v1202, 0
    %v1237 = vsel %vm425, %v1203, 0
    %v1240 = vsel %vm425, %v1204, 0
    %1242 = vmatprep.subr.bf16.mxu0 0
    %1243 = vmatpush1.bf16.msra.mxu0 %v1222
    %1244 = vmatprep.subr.bf16.mxu0 0
    %1245 = vmatpush1.bf16.msra.mxu0 %v1223
    %1246 = vmatprep.subr.bf16.mxu0 0
    %1247 = vmatpush1.bf16.msra.mxu0 %v1224
    %1248 = vmatprep.subr.bf16.mxu0 0
    %1249 = vmatpush1.bf16.msra.mxu0 %v1225
    %1250 = vmatprep.subr.bf16.mxu0 0
    %1251 = vmatpush1.bf16.msra.mxu0 0
    %1252 = vmatprep.subr.bf16.mxu0 0
    %1253 = vmatpush1.bf16.msra.mxu0 0
    %1254 = vmatprep.subr.bf16.mxu0 0
    %1255 = vmatpush1.bf16.msra.mxu0 0
    %1256 = vmatprep.subr.bf16.mxu0 0
    %1257 = vmatpush1.bf16.msra.mxu0 0
    %1258 = vmatprep.subr.bf16.mxu0 0
    %1259 = vmatpush1.bf16.msra.mxu0 0
    %1260 = vmatprep.subr.bf16.mxu0 0
    %1261 = vmatpush1.bf16.msra.mxu0 0
    %1262 = vmatprep.subr.bf16.mxu0 0
    %1263 = vmatpush1.bf16.msra.mxu0 0
    %1264 = vmatprep.subr.bf16.mxu0 0
    %1265 = vmatpush1.bf16.msra.mxu0 0
    %1266 = vmatprep.subr.bf16.mxu0 0
    %1267 = vmatpush1.bf16.msra.mxu0 0
    %1268 = vmatprep.subr.bf16.mxu0 0
    %1269 = vmatpush1.bf16.msra.mxu0 0
    %1270 = vmatprep.subr.bf16.mxu0 0
    %1271 = vmatpush1.bf16.msra.mxu0 0
    %1272 = vmatprep.subr.bf16.mxu0 0
    %1273 = vmatpush1.bf16.msra.mxu0 0
    %1274 = vmatprep.mubr.bf16.mxu0 0
    %1275 = vmatmul.mubr.bf16.gmra.mrb[0].mxu0 %v1231
    %v1276 = vpop.f32.mrb[0].mxu0
    %v1277 = vadd.f32 %v1205, %v1276
    %v1278 = vpop.f32.mrb[0].mxu0
    %v1279 = vpop.f32.mrb[0].mxu0
    %v1280 = vadd.f32 %v1205, %v1279
    %v1281 = vpop.f32.mrb[0].mxu0
    %1282 = vmatprep.mubr.bf16.mxu0 0
    %1283 = vmatmul.mubr.bf16.gmra.mrb[0].mxu0 %v1234
    %v1284 = vpop.f32.mrb[0].mxu0
    %v1285 = vadd.f32 %v1205, %v1284
    %v1286 = vpop.f32.mrb[0].mxu0
    %v1287 = vpop.f32.mrb[0].mxu0
    %v1288 = vadd.f32 %v1205, %v1287
    %v1289 = vpop.f32.mrb[0].mxu0
    %1290 = vmatprep.mubr.bf16.mxu0 0
    %1291 = vmatmul.mubr.bf16.gmra.mrb[0].mxu0 %v1237
    %v1292 = vpop.f32.mrb[0].mxu0
    %v1293 = vadd.f32 %v1205, %v1292
    %v1294 = vpop.f32.mrb[0].mxu0
    %v1295 = vpop.f32.mrb[0].mxu0
    %v1296 = vadd.f32 %v1205, %v1295
    %v1297 = vpop.f32.mrb[0].mxu0
    %1298 = vmatprep.mubr.bf16.mxu0 0
    %1299 = vmatmul.mubr.bf16.gmra.mrb[0].mxu0 %v1240
    %v1300 = vpop.f32.mrb[0].mxu0
    %v1301 = vadd.f32 %v1205, %v1300
    %v1302 = vpop.f32.mrb[0].mxu0
    %v1303 = vpop.f32.mrb[0].mxu0
    %v1304 = vadd.f32 %v1205, %v1303
    %v1305 = vpop.f32.mrb[0].mxu0
    %1306 = vdwg.mxu0
    %v1307 = vmax.f32 %v1277, 0.0
    %v1308 = vmax.f32 %v1280, 0.0
    %v1309 = vmax.f32 %v1285, 0.0
    %v1310 = vmax.f32 %v1288, 0.0
    %v1311 = vmax.f32 %v1293, 0.0
    %v1312 = vmax.f32 %v1296, 0.0
    %v1313 = vmax.f32 %v1301, 0.0
    %v1314 = vmax.f32 %v1304, 0.0
    %v1315 = vld [vmem:[%s2 + $0x60] sm:$0xf]
    %v1316 = vld [vmem:[%s2 + $0x64] sm:$0xf]
    %v1317 = vld [vmem:[%s2 + $0x68] sm:$0xf]
    %v1318 = vld [vmem:[%s2 + $0x6c] sm:$0xf]
    %v1319 = vld [vmem:[%s2 + $0x70] sm:$0xf]
    %v1320 = vld [vmem:[%s2 + $0x74] sm:$0xf]
    %v1321 = vld [vmem:[%s2 + $0x78] sm:$0xf]
    %v1322 = vld [vmem:[%s2 + $0x7c] sm:$0xf]
    %v1323 = vpack.c.bf16 %v1308, %v1307
    %v1324 = vpack.c.bf16 %v1310, %v1309
    %v1325 = vpack.c.bf16 %v1312, %v1311
    %v1326 = vpack.c.bf16 %v1314, %v1313
    %v1327 = vld [vmem:[%s3 + $0x6] ss:$0 sm:$0xff]
    %v1336 = vunpack.c.l.b16 %v1315
    %v1337 = vunpack.c.l.b16 %v1316
    %v1338 = vunpack.c.l.b16 %v1317
    %v1339 = vunpack.c.l.b16 %v1318
    %v1340 = vunpack.c.l.b16 %v1319
    %v1341 = vunpack.c.l.b16 %v1320
    %v1342 = vunpack.c.l.b16 %v1321
    %v1343 = vunpack.c.l.b16 %v1322
    %v1344 = vpack.c.b16 %v1337, %v1336
    %v1345 = vpack.c.b16 %v1339, %v1338
    %v1346 = vpack.c.b16 %v1341, %v1340
    %v1347 = vpack.c.b16 %v1343, %v1342
    %v1353 = vsel %vm425, %v1323, 0
    %v1356 = vsel %vm425, %v1324, 0
    %v1359 = vsel %vm425, %v1325, 0
    %v1362 = vsel %vm425, %v1326, 0
    %1364 = vmatprep.subr.bf16.mxu0 0
    %1365 = vmatpush1.bf16.msra.mxu0 %v1344
    %1366 = vmatprep.subr.bf16.mxu0 0
    %1367 = vmatpush1.bf16.msra.mxu0 %v1345
    %1368 = vmatprep.subr.bf16.mxu0 0
    %1369 = vmatpush1.bf16.msra.mxu0 %v1346
    %1370 = vmatprep.subr.bf16.mxu0 0
    %1371 = vmatpush1.bf16.msra.mxu0 %v1347
    %1372 = vmatprep.subr.bf16.mxu0 0
    %1373 = vmatpush1.bf16.msra.mxu0 0
    %1374 = vmatprep.subr.bf16.mxu0 0
    %1375 = vmatpush1.bf16.msra.mxu0 0
    %1376 = vmatprep.subr.bf16.mxu0 0
    %1377 = vmatpush1.bf16.msra.mxu0 0
    %1378 = vmatprep.subr.bf16.mxu0 0
    %1379 = vmatpush1.bf16.msra.mxu0 0
    %1380 = vmatprep.subr.bf16.mxu0 0
    %1381 = vmatpush1.bf16.msra.mxu0 0
    %1382 = vmatprep.subr.bf16.mxu0 0
    %1383 = vmatpush1.bf16.msra.mxu0 0
    %1384 = vmatprep.subr.bf16.mxu0 0
    %1385 = vmatpush1.bf16.msra.mxu0 0
    %1386 = vmatprep.subr.bf16.mxu0 0
    %1387 = vmatpush1.bf16.msra.mxu0 0
    %1388 = vmatprep.subr.bf16.mxu0 0
    %1389 = vmatpush1.bf16.msra.mxu0 0
    %1390 = vmatprep.subr.bf16.mxu0 0
    %1391 = vmatpush1.bf16.msra.mxu0 0
    %1392 = vmatprep.subr.bf16.mxu0 0
    %1393 = vmatpush1.bf16.msra.mxu0 0
    %1394 = vmatprep.subr.bf16.mxu0 0
    %1395 = vmatpush1.bf16.msra.mxu0 0
    %1396 = vmatprep.mubr.bf16.mxu0 0
    %1397 = vmatmul.mubr.bf16.gmra.mrb[0].mxu0 %v1353
    %v1398 = vpop.f32.mrb[0].mxu0
    %v1399 = vadd.f32 %v1327, %v1398
    %v1400 = vpop.f32.mrb[0].mxu0
    %v1401 = vpop.f32.mrb[0].mxu0
    %v1402 = vadd.f32 %v1327, %v1401
    %v1403 = vpop.f32.mrb[0].mxu0
    %1404 = vmatprep.mubr.bf16.mxu0 0
    %1405 = vmatmul.mubr.bf16.gmra.mrb[0].mxu0 %v1356
    %v1406 = vpop.f32.mrb[0].mxu0
    %v1407 = vadd.f32 %v1327, %v1406
    %v1408 = vpop.f32.mrb[0].mxu0
    %v1409 = vpop.f32.mrb[0].mxu0
    %v1410 = vadd.f32 %v1327, %v1409
    %v1411 = vpop.f32.mrb[0].mxu0
    %1412 = vmatprep.mubr.bf16.mxu0 0
    %1413 = vmatmul.mubr.bf16.gmra.mrb[0].mxu0 %v1359
    %v1414 = vpop.f32.mrb[0].mxu0
    %v1415 = vadd.f32 %v1327, %v1414
    %v1416 = vpop.f32.mrb[0].mxu0
    %v1417 = vpop.f32.mrb[0].mxu0
    %v1418 = vadd.f32 %v1327, %v1417
    %v1419 = vpop.f32.mrb[0].mxu0
    %1420 = vmatprep.mubr.bf16.mxu0 0
    %1421 = vmatmul.mubr.bf16.gmra.mrb[0].mxu0 %v1362
    %v1422 = vpop.f32.mrb[0].mxu0
    %v1423 = vadd.f32 %v1327, %v1422
    %v1424 = vpop.f32.mrb[0].mxu0
    %v1425 = vpop.f32.mrb[0].mxu0
    %v1426 = vadd.f32 %v1327, %v1425
    %v1427 = vpop.f32.mrb[0].mxu0
    %1428 = vdwg.mxu0
    %v1429 = vmax.f32 %v1399, 0.0
    %v1430 = vmax.f32 %v1402, 0.0
    %v1431 = vmax.f32 %v1407, 0.0
    %v1432 = vmax.f32 %v1410, 0.0
    %v1433 = vmax.f32 %v1415, 0.0
    %v1434 = vmax.f32 %v1418, 0.0
    %v1435 = vmax.f32 %v1423, 0.0
    %v1436 = vmax.f32 %v1426, 0.0
    %v1437 = vld [vmem:[%s2 + $0x80] sm:$0xf]
    %v1438 = vld [vmem:[%s2 + $0x84] sm:$0xf]
    %v1439 = vld [vmem:[%s2 + $0x88] sm:$0xf]
    %v1440 = vld [vmem:[%s2 + $0x8c] sm:$0xf]
    %v1441 = vld [vmem:[%s2 + $0x90] sm:$0xf]
    %v1442 = vld [vmem:[%s2 + $0x94] sm:$0xf]
    %v1443 = vld [vmem:[%s2 + $0x98] sm:$0xf]
    %v1444 = vld [vmem:[%s2 + $0x9c] sm:$0xf]
    %v1445 = vpack.c.bf16 %v1430, %v1429
    %v1446 = vpack.c.bf16 %v1432, %v1431
    %v1447 = vpack.c.bf16 %v1434, %v1433
    %v1448 = vpack.c.bf16 %v1436, %v1435
    %v1449 = vld [vmem:[%s3 + $0x7] ss:$0 sm:$0xff]
    %v1458 = vunpack.c.l.b16 %v1437
    %v1459 = vunpack.c.l.b16 %v1438
    %v1460 = vunpack.c.l.b16 %v1439
    %v1461 = vunpack.c.l.b16 %v1440
    %v1462 = vunpack.c.l.b16 %v1441
    %v1463 = vunpack.c.l.b16 %v1442
    %v1464 = vunpack.c.l.b16 %v1443
    %v1465 = vunpack.c.l.b16 %v1444
    %v1466 = vpack.c.b16 %v1459, %v1458
    %v1467 = vpack.c.b16 %v1461, %v1460
    %v1468 = vpack.c.b16 %v1463, %v1462
    %v1469 = vpack.c.b16 %v1465, %v1464
    %v1475 = vsel %vm425, %v1445, 0
    %v1478 = vsel %vm425, %v1446, 0
    %v1481 = vsel %vm425, %v1447, 0
    %v1484 = vsel %vm425, %v1448, 0
    %1486 = vmatprep.subr.bf16.mxu0 0
    %1487 = vmatpush1.bf16.msra.mxu0 %v1466
    %1488 = vmatprep.subr.bf16.mxu0 0
    %1489 = vmatpush1.bf16.msra.mxu0 %v1467
    %1490 = vmatprep.subr.bf16.mxu0 0
    %1491 = vmatpush1.bf16.msra.mxu0 %v1468
    %1492 = vmatprep.subr.bf16.mxu0 0
    %1493 = vmatpush1.bf16.msra.mxu0 %v1469
    %1494 = vmatprep.subr.bf16.mxu0 0
    %1495 = vmatpush1.bf16.msra.mxu0 0
    %1496 = vmatprep.subr.bf16.mxu0 0
    %1497 = vmatpush1.bf16.msra.mxu0 0
    %1498 = vmatprep.subr.bf16.mxu0 0
    %1499 = vmatpush1.bf16.msra.mxu0 0
    %1500 = vmatprep.subr.bf16.mxu0 0
    %1501 = vmatpush1.bf16.msra.mxu0 0
    %1502 = vmatprep.subr.bf16.mxu0 0
    %1503 = vmatpush1.bf16.msra.mxu0 0
    %1504 = vmatprep.subr.bf16.mxu0 0
    %1505 = vmatpush1.bf16.msra.mxu0 0
    %1506 = vmatprep.subr.bf16.mxu0 0
    %1507 = vmatpush1.bf16.msra.mxu0 0
    %1508 = vmatprep.subr.bf16.mxu0 0
    %1509 = vmatpush1.bf16.msra.mxu0 0
    %1510 = vmatprep.subr.bf16.mxu0 0
    %1511 = vmatpush1.bf16.msra.mxu0 0
    %1512 = vmatprep.subr.bf16.mxu0 0
    %1513 = vmatpush1.bf16.msra.mxu0 0
    %1514 = vmatprep.subr.bf16.mxu0 0
    %1515 = vmatpush1.bf16.msra.mxu0 0
    %1516 = vmatprep.subr.bf16.mxu0 0
    %1517 = vmatpush1.bf16.msra.mxu0 0
    %1518 = vmatprep.mubr.bf16.mxu0 0
    %1519 = vmatmul.mubr.bf16.gmra.mrb[0].mxu0 %v1475
    %v1520 = vpop.f32.mrb[0].mxu0
    %v1521 = vadd.f32 %v1449, %v1520
    %v1522 = vpop.f32.mrb[0].mxu0
    %v1523 = vpop.f32.mrb[0].mxu0
    %v1524 = vadd.f32 %v1449, %v1523
    %v1525 = vpop.f32.mrb[0].mxu0
    %1526 = vmatprep.mubr.bf16.mxu0 0
    %1527 = vmatmul.mubr.bf16.gmra.mrb[0].mxu0 %v1478
    %v1528 = vpop.f32.mrb[0].mxu0
    %v1529 = vadd.f32 %v1449, %v1528
    %v1530 = vpop.f32.mrb[0].mxu0
    %v1531 = vpop.f32.mrb[0].mxu0
    %v1532 = vadd.f32 %v1449, %v1531
    %v1533 = vpop.f32.mrb[0].mxu0
    %1534 = vmatprep.mubr.bf16.mxu0 0
    %1535 = vmatmul.mubr.bf16.gmra.mrb[0].mxu0 %v1481
    %v1536 = vpop.f32.mrb[0].mxu0
    %v1537 = vadd.f32 %v1449, %v1536
    %v1538 = vpop.f32.mrb[0].mxu0
    %v1539 = vpop.f32.mrb[0].mxu0
    %v1540 = vadd.f32 %v1449, %v1539
    %v1541 = vpop.f32.mrb[0].mxu0
    %1542 = vmatprep.mubr.bf16.mxu0 0
    %1543 = vmatmul.mubr.bf16.gmra.mrb[0].mxu0 %v1484
    %v1544 = vpop.f32.mrb[0].mxu0
    %v1545 = vadd.f32 %v1449, %v1544
    %v1546 = vpop.f32.mrb[0].mxu0
    %v1547 = vpop.f32.mrb[0].mxu0
    %v1548 = vadd.f32 %v1449, %v1547
    %v1549 = vpop.f32.mrb[0].mxu0
    %1550 = vdwg.mxu0
    %1551 = vst [vmem:[#allocation2] sm:$0xff] %v1521
    %1552 = vst [vmem:[#allocation2 + $0x8] sm:$0xff] %v1524
    %1553 = vst [vmem:[#allocation2 + $0x10] sm:$0xff] %v1529
    %1554 = vst [vmem:[#allocation2 + $0x18] sm:$0xff] %v1532
    %1555 = vst [vmem:[#allocation2 + $0x20] sm:$0xff] %v1537
    %1556 = vst [vmem:[#allocation2 + $0x28] sm:$0xff] %v1540
    %1557 = vst [vmem:[#allocation2 + $0x30] sm:$0xff] %v1545
    %1558 = vst [vmem:[#allocation2 + $0x38] sm:$0xff] %v1548
    // Predicated region
    $region18: #{tpu_custom_call.1} parent=1 // pred_check
      _
    $region19: #{tpu_custom_call.1} parent=1 // pred_check_branch
      %1560 = sbr.rel (0) target = $region21
    $region20: #{tpu_custom_call.1} parent=1 // pred_region
      %s1562 = ssub.s32 1024, 1024
      %1563 = vsyncadd [#allocation3], %s1562
      %s1564 = sshll.u32 [#allocation2], 4
      %s1565 = int_to_ptr.vmem [resolvable:$true] %s1564
      %1570 = dma.vmem_to_hbm [thread:$0]  %s1565, 1024, %s4, [#allocation3], 128, 128, 8
    $region21: #{tpu_custom_call.1} parent=1 // pred_fallthru
      _
    // Predicated region
    $region22: #{tpu_custom_call.1} parent=1 // pred_check
      _
    $region23: #{tpu_custom_call.1} parent=1 // pred_check_branch
      %1572 = sbr.rel (0) target = $region25
    $region24: #{tpu_custom_call.1} parent=1 // pred_region
      %1573 = dma.done [#allocation3], 1024
    $region25: #{tpu_custom_call.1} parent=1 // pred_fallthru
      _
    %1574 = vsyncpa [#allocation3], 1

</llo_original>
